<compile_context>
chip_gen: v5e
topology: v5e:2x2
jax: 0.10.0
libtpu: 0.0.40
codegen_flags: <defaults>
</compile_context>

<pallas_src>
import functools

import jax
import jax.numpy as jnp
from jax.experimental import pallas as pl
from jax.experimental.pallas import tpu as pltpu

LANE = 128
SUBLANE = 8


def _round_up(x, m):
    return (x + m - 1) // m * m


def mlp_head_kernel(x_ref, w1_ref, b1_ref, w2_ref, b2_ref, w3_ref, b3_ref,
                    o_ref, acc_ref):
    # Grid axis 0 walks K-chunks of the flattened feature dim (reduction).
    k = pl.program_id(0)

    @pl.when(k == 0)
    def _init():
        acc_ref[...] = jnp.zeros_like(acc_ref)

    # Layer-1 partial product for this K-chunk: bf16 MXU matmul, f32 accumulate.
    acc_ref[...] += jnp.dot(
        x_ref[...].astype(jnp.bfloat16), w1_ref[...],
        preferred_element_type=jnp.float32)

    @pl.when(k == pl.num_programs(0) - 1)
    def _finalize():
        h1 = jnp.maximum(acc_ref[...] + b1_ref[...], 0.0)
        h2 = jnp.dot(h1.astype(jnp.bfloat16), w2_ref[...],
                     preferred_element_type=jnp.float32)
        h2 = jnp.maximum(h2 + b2_ref[...], 0.0)
        out = jnp.dot(h2.astype(jnp.bfloat16), w3_ref[...],
                      preferred_element_type=jnp.float32)
        o_ref[...] = (out + b3_ref[...]).astype(o_ref.dtype)


@functools.partial(jax.jit, static_argnames=("block_k",))
def mlp_head(x, w1, b1, w2, b2, w3, b3, *, block_k=512):
    """x: [B, C, H, W] float32 -> [B, num_outputs] float32."""
    B = x.shape[0]
    x2d = x.reshape(B, -1).astype(jnp.float32)  # matches torch .view(B, -1)
    F = x2d.shape[1]
    H1 = w1.shape[1]   # 512
    H2 = w2.shape[1]   # 256
    NO = w3.shape[1]   # num_outputs (15)

    # ---- host-side layout / dtype prep ----------------------------------
    tk = min(block_k, _round_up(F, LANE))    # K-tile (multiple of 128)
    Fp = _round_up(F, tk)                    # zero-pad reduction axis
    Bp = _round_up(B, SUBLANE)               # sublane-pad the batch
    NOp = _round_up(NO, LANE)                # lane-dense output columns

    x_p = jnp.zeros((Bp, Fp), jnp.float32).at[:B, :F].set(x2d)
    w1_p = jnp.zeros((Fp, H1), jnp.bfloat16).at[:F, :].set(w1.astype(jnp.bfloat16))
    w2_b = w2.astype(jnp.bfloat16)
    w3_p = jnp.zeros((H2, NOp), jnp.bfloat16).at[:, :NO].set(w3.astype(jnp.bfloat16))
    b1_f = b1.reshape(1, H1).astype(jnp.float32)
    b2_f = b2.reshape(1, H2).astype(jnp.float32)
    b3_p = jnp.zeros((1, NOp), jnp.float32).at[:, :NO].set(
        b3.reshape(1, NO).astype(jnp.float32))

    n_k = Fp // tk

    cost = pl.CostEstimate(
        flops=2 * B * (F * H1 + H1 * H2 + H2 * NO),
        transcendentals=0,
        bytes_accessed=(x_p.size * 4 + w1_p.size * 2 + w2_b.size * 2
                        + w3_p.size * 2 + (H1 + H2 + NOp) * 4 + Bp * NOp * 4),
    )

    out_p = pl.pallas_call(
        mlp_head_kernel,
        out_shape=jax.ShapeDtypeStruct((Bp, NOp), jnp.float32),
        grid_spec=pltpu.PrefetchScalarGridSpec(
            num_scalar_prefetch=0,
            grid=(n_k,),
            in_specs=[
                pl.BlockSpec((Bp, tk), lambda k: (0, k)),    # x K-chunk (pipelined)
                pl.BlockSpec((tk, H1), lambda k: (k, 0)),    # w1 K-chunk (pipelined)
                pl.BlockSpec((1, H1), lambda k: (0, 0)),     # b1 (resident)
                pl.BlockSpec((H1, H2), lambda k: (0, 0)),    # w2 (resident)
                pl.BlockSpec((1, H2), lambda k: (0, 0)),     # b2 (resident)
                pl.BlockSpec((H2, NOp), lambda k: (0, 0)),   # w3 padded (resident)
                pl.BlockSpec((1, NOp), lambda k: (0, 0)),    # b3 padded (resident)
            ],
            out_specs=pl.BlockSpec((Bp, NOp), lambda k: (0, 0)),
            scratch_shapes=[pltpu.VMEM((Bp, H1), jnp.float32)],  # layer-1 acc
        ),
        compiler_params=pltpu.CompilerParams(
            dimension_semantics=("arbitrary",),  # K is a reduction axis
        ),
        cost_estimate=cost,
    )(x_p, w1_p, b1_f, w2_b, b2_f, w3_p, b3_p)

    return out_p[:B, :NO]


def init_params(key, in_features, num_outputs=15):
    """Deterministic synthetic params (PyTorch-like uniform fan-in init)."""
    dims = [(in_features, 512), (512, 256), (256, num_outputs)]
    params = []
    for fan_in, fan_out in dims:
        kw, kb, key = jax.random.split(key, 3)
        bound = 1.0 / (fan_in ** 0.5)
        w = jax.random.uniform(kw, (fan_in, fan_out), jnp.float32, -bound, bound)
        b = jax.random.uniform(kb, (1, fan_out), jnp.float32, -bound, bound)
        params += [w, b]
    return params


def reference(x, w1, b1, w2, b2, w3, b3):
    x2d = x.reshape(x.shape[0], -1)
    h1 = jnp.maximum(x2d @ w1 + b1, 0.0)
    h2 = jnp.maximum(h1 @ w2 + b2, 0.0)
    return h2 @ w3 + b3


if __name__ == "__main__":
    key = jax.random.PRNGKey(0)
    kx, kp = jax.random.split(key)

    B, C, H, W = 2, 4, 16, 16          # in_features = 4*16*16 = 1024
    num_outputs = 15
    x = jax.random.normal(kx, (B, C, H, W), jnp.float32)
    w1, b1, w2, b2, w3, b3 = init_params(kp, C * H * W, num_outputs)

    out = mlp_head(x, w1, b1, w2, b2, w3, b3)
    out = jax.block_until_ready(out)

    ref = reference(x, w1, b1, w2, b2, w3, b3)
    assert out.shape == (B, num_outputs)
    # Weights/activations run through bf16 on the MXU (f32 accumulate)
    # -> loosened tolerance vs the pure-f32 reference.
    assert jnp.allclose(out, ref, atol=2e-2, rtol=2e-2), "mismatch vs reference"

    print("KERNEL_OK")
</pallas_src>

<mosaic_0001>
module attributes {stable_mosaic.version = 11 : i64} {
  func.func @mlp_head_kernel(%arg0: i32, %arg1: memref<8x512xf32, #tpu.memory_space<vmem>>, %arg2: memref<512x512xbf16, #tpu.memory_space<vmem>>, %arg3: memref<1x512xf32, #tpu.memory_space<vmem>>, %arg4: memref<512x256xbf16, #tpu.memory_space<vmem>>, %arg5: memref<1x256xf32, #tpu.memory_space<vmem>>, %arg6: memref<256x128xbf16, #tpu.memory_space<vmem>>, %arg7: memref<1x128xf32, #tpu.memory_space<vmem>>, %arg8: memref<8x128xf32, #tpu.memory_space<vmem>>, %arg9: memref<8x512xf32, #tpu.memory_space<vmem>>) attributes {dimension_semantics = [#tpu.dimension_semantics<arbitrary>], iteration_bounds = array<i64: 2>, scalar_prefetch = 0 : i64, scratch_operands = 1 : i64, tpu.core_type = #tpu.core_type<tc>, window_params = [{transform_indices = @transform_0, window_bounds = array<i64: 8, 512>}, {transform_indices = @transform_1, window_bounds = array<i64: 512, 512>}, {pipeline_mode = #tpu.pipeline_mode<synchronous>, transform_indices = @transform_2, window_bounds = array<i64: 1, 512>}, {pipeline_mode = #tpu.pipeline_mode<synchronous>, transform_indices = @transform_3, window_bounds = array<i64: 512, 256>}, {pipeline_mode = #tpu.pipeline_mode<synchronous>, transform_indices = @transform_4, window_bounds = array<i64: 1, 256>}, {pipeline_mode = #tpu.pipeline_mode<synchronous>, transform_indices = @transform_5, window_bounds = array<i64: 256, 128>}, {pipeline_mode = #tpu.pipeline_mode<synchronous>, transform_indices = @transform_6, window_bounds = array<i64: 1, 128>}, {pipeline_mode = #tpu.pipeline_mode<synchronous>, transform_indices = @transform_7, window_bounds = array<i64: 8, 128>}]} {
    %c0_i32 = arith.constant 0 : i32
    %0 = arith.cmpi eq, %arg0, %c0_i32 : i32
    %1 = arith.extui %0 : i1 to i32
    %c0_i32_0 = arith.constant 0 : i32
    %2 = arith.cmpi ne, %1, %c0_i32_0 : i32
    scf.if %2 {
      %cst_9 = arith.constant 0.000000e+00 : f32
      %13 = vector.broadcast %cst_9 : f32 to vector<8x512xf32>
      %c0_10 = arith.constant 0 : index
      %c0_11 = arith.constant 0 : index
      %14 = vector.load %arg9[%c0_10, %c0_11] : memref<8x512xf32, #tpu.memory_space<vmem>>, vector<8x512xf32>
      tpu.vector_store %arg9[%c0_10, %c0_11], %13 {strides = array<i32>} : memref<8x512xf32, #tpu.memory_space<vmem>>, vector<8x512xf32>,
    } else {
    }
    %c0 = arith.constant 0 : index
    %c0_1 = arith.constant 0 : index
    %3 = vector.load %arg9[%c0, %c0_1] : memref<8x512xf32, #tpu.memory_space<vmem>>, vector<8x512xf32>
    %c0_2 = arith.constant 0 : index
    %c0_3 = arith.constant 0 : index
    %4 = vector.load %arg1[%c0_2, %c0_3] : memref<8x512xf32, #tpu.memory_space<vmem>>, vector<8x512xf32>
    %5 = arith.truncf %4 : vector<8x512xf32> to vector<8x512xbf16>
    %c0_4 = arith.constant 0 : index
    %c0_5 = arith.constant 0 : index
    %6 = vector.load %arg2[%c0_4, %c0_5] : memref<512x512xbf16, #tpu.memory_space<vmem>>, vector<512x512xbf16>
    %cst = arith.constant dense<0.000000e+00> : vector<8x512xf32>
    %7 = tpu.matmul %5, %6, %cst {dimension_numbers = #tpu.dot_dimension_numbers<[1], [0], [0], [1], [0, 0, 1, 1], [], []>} : vector<8x512xbf16>, vector<512x512xbf16>, vector<8x512xf32> -> vector<8x512xf32>
    %8 = arith.addf %3, %7 : vector<8x512xf32>
    %c0_6 = arith.constant 0 : index
    %c0_7 = arith.constant 0 : index
    %9 = vector.load %arg9[%c0_6, %c0_7] : memref<8x512xf32, #tpu.memory_space<vmem>>, vector<8x512xf32>
    tpu.vector_store %arg9[%c0_6, %c0_7], %8 {strides = array<i32>} : memref<8x512xf32, #tpu.memory_space<vmem>>, vector<8x512xf32>,
    %c1_i32 = arith.constant 1 : i32
    %10 = arith.cmpi eq, %arg0, %c1_i32 : i32
    %11 = arith.extui %10 : i1 to i32
    %c0_i32_8 = arith.constant 0 : i32
    %12 = arith.cmpi ne, %11, %c0_i32_8 : i32
    scf.if %12 {
      %c0_9 = arith.constant 0 : index
      %c0_10 = arith.constant 0 : index
      %13 = vector.load %arg9[%c0_9, %c0_10] : memref<8x512xf32, #tpu.memory_space<vmem>>, vector<8x512xf32>
      %c0_11 = arith.constant 0 : index
      %c0_12 = arith.constant 0 : index
      %14 = vector.load %arg3[%c0_11, %c0_12] : memref<1x512xf32, #tpu.memory_space<vmem>>, vector<1x512xf32>
      %15 = vector.broadcast %14 : vector<1x512xf32> to vector<8x512xf32>
      %16 = arith.addf %13, %15 : vector<8x512xf32>
      %cst_13 = arith.constant 0.000000e+00 : f32
      %17 = vector.broadcast %cst_13 : f32 to vector<8x512xf32>
      %18 = arith.maximumf %16, %17 : vector<8x512xf32>
      %19 = arith.truncf %18 : vector<8x512xf32> to vector<8x512xbf16>
      %c0_14 = arith.constant 0 : index
      %c0_15 = arith.constant 0 : index
      %20 = vector.load %arg4[%c0_14, %c0_15] : memref<512x256xbf16, #tpu.memory_space<vmem>>, vector<512x256xbf16>
      %cst_16 = arith.constant dense<0.000000e+00> : vector<8x256xf32>
      %21 = tpu.matmul %19, %20, %cst_16 {dimension_numbers = #tpu.dot_dimension_numbers<[1], [0], [0], [1], [0, 0, 1, 1], [], []>} : vector<8x512xbf16>, vector<512x256xbf16>, vector<8x256xf32> -> vector<8x256xf32>
      %c0_17 = arith.constant 0 : index
      %c0_18 = arith.constant 0 : index
      %22 = vector.load %arg5[%c0_17, %c0_18] : memref<1x256xf32, #tpu.memory_space<vmem>>, vector<1x256xf32>
      %23 = vector.broadcast %22 : vector<1x256xf32> to vector<8x256xf32>
      %24 = arith.addf %21, %23 : vector<8x256xf32>
      %cst_19 = arith.constant 0.000000e+00 : f32
      %25 = vector.broadcast %cst_19 : f32 to vector<8x256xf32>
      %26 = arith.maximumf %24, %25 : vector<8x256xf32>
      %27 = arith.truncf %26 : vector<8x256xf32> to vector<8x256xbf16>
      %c0_20 = arith.constant 0 : index
      %c0_21 = arith.constant 0 : index
      %28 = vector.load %arg6[%c0_20, %c0_21] : memref<256x128xbf16, #tpu.memory_space<vmem>>, vector<256x128xbf16>
      %cst_22 = arith.constant dense<0.000000e+00> : vector<8x128xf32>
      %29 = tpu.matmul %27, %28, %cst_22 {dimension_numbers = #tpu.dot_dimension_numbers<[1], [0], [0], [1], [0, 0, 1, 1], [], []>} : vector<8x256xbf16>, vector<256x128xbf16>, vector<8x128xf32> -> vector<8x128xf32>
      %c0_23 = arith.constant 0 : index
      %c0_24 = arith.constant 0 : index
      %30 = vector.load %arg7[%c0_23, %c0_24] : memref<1x128xf32, #tpu.memory_space<vmem>>, vector<1x128xf32>
      %31 = vector.broadcast %30 : vector<1x128xf32> to vector<8x128xf32>
      %32 = arith.addf %29, %31 : vector<8x128xf32>
      %c0_25 = arith.constant 0 : index
      %c0_26 = arith.constant 0 : index
      %33 = vector.load %arg8[%c0_25, %c0_26] : memref<8x128xf32, #tpu.memory_space<vmem>>, vector<8x128xf32>
      tpu.vector_store %arg8[%c0_25, %c0_26], %32 {strides = array<i32>} : memref<8x128xf32, #tpu.memory_space<vmem>>, vector<8x128xf32>,
    } else {
    }
    return
  }
  func.func @transform_0(%arg0: i32) -> (i32, i32) {
    %c0_i32 = arith.constant 0 : i32
    %c0_i32_0 = arith.constant 0 : i32
    return %c0_i32, %arg0 : i32, i32
  }
  func.func @transform_1(%arg0: i32) -> (i32, i32) {
    %c0_i32 = arith.constant 0 : i32
    %c0_i32_0 = arith.constant 0 : i32
    return %arg0, %c0_i32 : i32, i32
  }
  func.func @transform_2(%arg0: i32) -> (i32, i32) {
    %c0_i32 = arith.constant 0 : i32
    %c0_i32_0 = arith.constant 0 : i32
    %c0_i32_1 = arith.constant 0 : i32
    return %c0_i32, %c0_i32_0 : i32, i32
  }
  func.func @transform_3(%arg0: i32) -> (i32, i32) {
    %c0_i32 = arith.constant 0 : i32
    %c0_i32_0 = arith.constant 0 : i32
    %c0_i32_1 = arith.constant 0 : i32
    return %c0_i32, %c0_i32_0 : i32, i32
  }
  func.func @transform_4(%arg0: i32) -> (i32, i32) {
    %c0_i32 = arith.constant 0 : i32
    %c0_i32_0 = arith.constant 0 : i32
    %c0_i32_1 = arith.constant 0 : i32
    return %c0_i32, %c0_i32_0 : i32, i32
  }
  func.func @transform_5(%arg0: i32) -> (i32, i32) {
    %c0_i32 = arith.constant 0 : i32
    %c0_i32_0 = arith.constant 0 : i32
    %c0_i32_1 = arith.constant 0 : i32
    return %c0_i32, %c0_i32_0 : i32, i32
  }
  func.func @transform_6(%arg0: i32) -> (i32, i32) {
    %c0_i32 = arith.constant 0 : i32
    %c0_i32_0 = arith.constant 0 : i32
    %c0_i32_1 = arith.constant 0 : i32
    return %c0_i32, %c0_i32_0 : i32, i32
  }
  func.func @transform_7(%arg0: i32) -> (i32, i32) {
    %c0_i32 = arith.constant 0 : i32
    %c0_i32_0 = arith.constant 0 : i32
    %c0_i32_1 = arith.constant 0 : i32
    return %c0_i32, %c0_i32_0 : i32, i32
  }
}

</mosaic_0001>

<llo_original>
// kernel: mlp_head.1
$region0: #{mlp_head.1}
  #allocation0 [shape = 'u32[]', space=smem, size = 0x4, offset = 0x4, fixed_abs, tag = 'smem constant byte address 0x4 - core index']
  #allocation1 [shape = 'u32[72,128]{1,0:T(1,128)}', space=vmem, size = 0x9000, scoped, tag = 'internal scratch']
  #allocation2 [shape = 'f32[8,512]{1,0:T(8,128)}', space=vmem, size = 0x4000, scoped, tag = 'scratch operand']
  %s0 = inlined_call_operand.vmem [shape: f32[8,1024], index: 0, kind: input, shape index: {}]
  %s1 = inlined_call_operand.vmem [shape: bf16[1024,512], index: 1, kind: input, shape index: {}]
  %s2 = inlined_call_operand.vmem [shape: f32[1,512], index: 2, kind: input, shape index: {}]
  %s3 = inlined_call_operand.vmem [shape: bf16[512,256], index: 3, kind: input, shape index: {}]
  %s4 = inlined_call_operand.vmem [shape: f32[1,256], index: 4, kind: input, shape index: {}]
  %s5 = inlined_call_operand.vmem [shape: bf16[256,128], index: 5, kind: input, shape index: {}]
  %s6 = inlined_call_operand.vmem [shape: f32[1,128], index: 6, kind: input, shape index: {}]
  %s7 = inlined_call_operand.vmem [shape: f32[8,128], index: 7, kind: output, shape index: {}]
  %s8 = sld [smem:[#allocation0]]
  $region69: #{mlp_head.1} parent=0
    _
  %s10 = ssub.s32 1, %s8
  %s11 = scalar_select 0, %s10, %s8
  loop: start=0, step=1, limit=4
  $region2: #{mlp_head.1} parent=0 // loop_pre_header
    _
  $region3: #{mlp_head.1} parent=0 // loop_header
    %s13 = sphi 0, %s17
    %p14 = scmp.ge.s32.totalorder %s13, 4
    %s23 = sphi 0, %s25
    %s26 = sphi 0, %s23
    %s27 = sphi 0, %s26
    %s43 = sphi 0, %s27
    %s49 = sphi 0, %s51
    %s52 = sphi 0, %s49
    %s53 = sphi 0, %s52
    %s69 = sphi 0, %s53
    %s73 = sphi 0, %s73
    %s75 = sphi 0, %s73
    %s76 = sphi 0, %s75
    %s90 = sphi 0, %s76
    %s94 = sphi 0, %s94
    %s96 = sphi 0, %s94
    %s97 = sphi 0, %s96
    %s111 = sphi 0, %s97
    %s115 = sphi 0, %s115
    %s117 = sphi 0, %s115
    %s118 = sphi 0, %s117
    %s132 = sphi 0, %s118
    %s136 = sphi 0, %s136
    %s138 = sphi 0, %s136
    %s139 = sphi 0, %s138
    %s153 = sphi 0, %s139
    %s157 = sphi 0, %s157
    %s159 = sphi 0, %s157
    %s160 = sphi 0, %s159
    %s174 = sphi 0, %s160
    %s178 = sphi 0, %s178
    %s180 = sphi 0, %s178
    %s181 = sphi 0, %s180
    %s195 = sphi 0, %s181
  $region4: #{mlp_head.1} parent=0 // loop_header_branch
    %16 = sbr.rel (%p14) target = $region8
  $region5: #{mlp_head.1} parent=0 // loop_body
    %s18 = ssub.s32 %s13, 1
    %s19 = ssub.s32 %s13, 2
    %s20 = sadd.s32 %s13, 1
    %s21 = ssub.s32 %s13, %s20
    %p22 = scmp.eq.s32.totalorder %s21, 0
    %s24 = sadd.s32 %s23, 1
    %s25 = scalar_select %p22, %s23, %s24
    %p28 = pneg %p22
    %p29 = scmp.eq.s32.totalorder %s13, 1
    %p30 = por %p28, %p29
    %p31 = scmp.ne.s32.totalorder %s23, %s26
    %p32 = scmp.eq.s32.totalorder %s13, 0
    %p33 = por %p31, %p32
    %p34 = scmp.ne.s32.totalorder %s23, %s26
    %p35 = scmp.eq.s32.totalorder %s18, 1
    %p36 = por %p34, %p35
    %p37 = scmp.ne.s32.totalorder %s26, %s27
    %p38 = scmp.eq.s32.totalorder %s18, 0
    %p39 = por %p37, %p38
    %p40 = scmp.ne.s32.totalorder %s26, %s27
    %p41 = scmp.eq.s32.totalorder %s19, 1
    %p42 = por %p40, %p41
    %p44 = scmp.ne.s32.totalorder %s27, %s43
    %p45 = scmp.eq.s32.totalorder %s19, 0
    %p46 = por %p44, %p45
    %s47 = ssub.s32 %s13, %s20
    %p48 = scmp.eq.s32.totalorder %s47, 0
    %s50 = sadd.s32 %s49, 1
    %s51 = scalar_select %p48, %s49, %s50
    %p54 = pneg %p48
    %p55 = scmp.eq.s32.totalorder %s13, 1
    %p56 = por %p54, %p55
    %p57 = scmp.ne.s32.totalorder %s49, %s52
    %p58 = scmp.eq.s32.totalorder %s13, 0
    %p59 = por %p57, %p58
    %p60 = scmp.ne.s32.totalorder %s49, %s52
    %p61 = scmp.eq.s32.totalorder %s18, 1
    %p62 = por %p60, %p61
    %p63 = scmp.ne.s32.totalorder %s52, %s53
    %p64 = scmp.eq.s32.totalorder %s18, 0
    %p65 = por %p63, %p64
    %p66 = scmp.ne.s32.totalorder %s52, %s53
    %p67 = scmp.eq.s32.totalorder %s19, 1
    %p68 = por %p66, %p67
    %p70 = scmp.ne.s32.totalorder %s53, %s69
    %p71 = scmp.eq.s32.totalorder %s19, 0
    %p72 = por %p70, %p71
    %s74 = sadd.s32 %s73, 1
    %p77 = scmp.eq.s32.totalorder %s13, 1
    %p78 = scmp.ne.s32.totalorder %s73, %s75
    %p79 = scmp.eq.s32.totalorder %s13, 0
    %p80 = por %p78, %p79
    %p81 = scmp.ne.s32.totalorder %s73, %s75
    %p82 = scmp.eq.s32.totalorder %s18, 1
    %p83 = por %p81, %p82
    %p84 = scmp.ne.s32.totalorder %s75, %s76
    %p85 = scmp.eq.s32.totalorder %s18, 0
    %p86 = por %p84, %p85
    %p87 = scmp.ne.s32.totalorder %s75, %s76
    %p88 = scmp.eq.s32.totalorder %s19, 1
    %p89 = por %p87, %p88
    %p91 = scmp.ne.s32.totalorder %s76, %s90
    %p92 = scmp.eq.s32.totalorder %s19, 0
    %p93 = por %p91, %p92
    %s95 = sadd.s32 %s94, 1
    %p98 = scmp.eq.s32.totalorder %s13, 1
    %p99 = scmp.ne.s32.totalorder %s94, %s96
    %p100 = scmp.eq.s32.totalorder %s13, 0
    %p101 = por %p99, %p100
    %p102 = scmp.ne.s32.totalorder %s94, %s96
    %p103 = scmp.eq.s32.totalorder %s18, 1
    %p104 = por %p102, %p103
    %p105 = scmp.ne.s32.totalorder %s96, %s97
    %p106 = scmp.eq.s32.totalorder %s18, 0
    %p107 = por %p105, %p106
    %p108 = scmp.ne.s32.totalorder %s96, %s97
    %p109 = scmp.eq.s32.totalorder %s19, 1
    %p110 = por %p108, %p109
    %p112 = scmp.ne.s32.totalorder %s97, %s111
    %p113 = scmp.eq.s32.totalorder %s19, 0
    %p114 = por %p112, %p113
    %s116 = sadd.s32 %s115, 1
    %p119 = scmp.eq.s32.totalorder %s13, 1
    %p120 = scmp.ne.s32.totalorder %s115, %s117
    %p121 = scmp.eq.s32.totalorder %s13, 0
    %p122 = por %p120, %p121
    %p123 = scmp.ne.s32.totalorder %s115, %s117
    %p124 = scmp.eq.s32.totalorder %s18, 1
    %p125 = por %p123, %p124
    %p126 = scmp.ne.s32.totalorder %s117, %s118
    %p127 = scmp.eq.s32.totalorder %s18, 0
    %p128 = por %p126, %p127
    %p129 = scmp.ne.s32.totalorder %s117, %s118
    %p130 = scmp.eq.s32.totalorder %s19, 1
    %p131 = por %p129, %p130
    %p133 = scmp.ne.s32.totalorder %s118, %s132
    %p134 = scmp.eq.s32.totalorder %s19, 0
    %p135 = por %p133, %p134
    %s137 = sadd.s32 %s136, 1
    %p140 = scmp.eq.s32.totalorder %s13, 1
    %p141 = scmp.ne.s32.totalorder %s136, %s138
    %p142 = scmp.eq.s32.totalorder %s13, 0
    %p143 = por %p141, %p142
    %p144 = scmp.ne.s32.totalorder %s136, %s138
    %p145 = scmp.eq.s32.totalorder %s18, 1
    %p146 = por %p144, %p145
    %p147 = scmp.ne.s32.totalorder %s138, %s139
    %p148 = scmp.eq.s32.totalorder %s18, 0
    %p149 = por %p147, %p148
    %p150 = scmp.ne.s32.totalorder %s138, %s139
    %p151 = scmp.eq.s32.totalorder %s19, 1
    %p152 = por %p150, %p151
    %p154 = scmp.ne.s32.totalorder %s139, %s153
    %p155 = scmp.eq.s32.totalorder %s19, 0
    %p156 = por %p154, %p155
    %s158 = sadd.s32 %s157, 1
    %p161 = scmp.eq.s32.totalorder %s13, 1
    %p162 = scmp.ne.s32.totalorder %s157, %s159
    %p163 = scmp.eq.s32.totalorder %s13, 0
    %p164 = por %p162, %p163
    %p165 = scmp.ne.s32.totalorder %s157, %s159
    %p166 = scmp.eq.s32.totalorder %s18, 1
    %p167 = por %p165, %p166
    %p168 = scmp.ne.s32.totalorder %s159, %s160
    %p169 = scmp.eq.s32.totalorder %s18, 0
    %p170 = por %p168, %p169
    %p171 = scmp.ne.s32.totalorder %s159, %s160
    %p172 = scmp.eq.s32.totalorder %s19, 1
    %p173 = por %p171, %p172
    %p175 = scmp.ne.s32.totalorder %s160, %s174
    %p176 = scmp.eq.s32.totalorder %s19, 0
    %p177 = por %p175, %p176
    %s179 = sadd.s32 %s178, 1
    %p182 = scmp.eq.s32.totalorder %s13, 1
    %p183 = scmp.ne.s32.totalorder %s178, %s180
    %p184 = scmp.eq.s32.totalorder %s13, 0
    %p185 = por %p183, %p184
    %p186 = scmp.ne.s32.totalorder %s178, %s180
    %p187 = scmp.eq.s32.totalorder %s18, 1
    %p188 = por %p186, %p187
    %p189 = scmp.ne.s32.totalorder %s180, %s181
    %p190 = scmp.eq.s32.totalorder %s18, 0
    %p191 = por %p189, %p190
    %p192 = scmp.ne.s32.totalorder %s180, %s181
    %p193 = scmp.eq.s32.totalorder %s19, 1
    %p194 = por %p192, %p193
    %p196 = scmp.ne.s32.totalorder %s181, %s195
    %p197 = scmp.eq.s32.totalorder %s19, 0
    %p198 = por %p196, %p197
    %p199 = scmp.le.s32.totalorder 1, %s13
    %p200 = scmp.lt.s32.totalorder %s13, 3
    %p201 = pnand %p199, %p200
    %p202 = pneg %p201
    // Predicated region
    $region9: #{mlp_head.1} parent=5 // pred_check
      _
    $region10: #{mlp_head.1} parent=5 // pred_check_branch
      %204 = sbr.rel (%p201) target = $region12
    $region11: #{mlp_head.1} parent=5 // pred_region
      %s205 = ssub.s32 %s13, 1
      // Predicated region
      $region13: #{mlp_head.1} parent=11 // pred_check
        %p206 = pneg %p86
      $region14: #{mlp_head.1} parent=11 // pred_check_branch
        %208 = sbr.rel (%p206) target = $region16
      $region15: #{mlp_head.1} parent=11 // pred_region
        _
      $region16: #{mlp_head.1} parent=11 // pred_fallthru
        _
      // Predicated region
      $region17: #{mlp_head.1} parent=11 // pred_check
        %p209 = pneg %p107
      $region18: #{mlp_head.1} parent=11 // pred_check_branch
        %211 = sbr.rel (%p209) target = $region20
      $region19: #{mlp_head.1} parent=11 // pred_region
        _
      $region20: #{mlp_head.1} parent=11 // pred_fallthru
        _
      // Predicated region
      $region21: #{mlp_head.1} parent=11 // pred_check
        %p212 = pneg %p128
      $region22: #{mlp_head.1} parent=11 // pred_check_branch
        %214 = sbr.rel (%p212) target = $region24
      $region23: #{mlp_head.1} parent=11 // pred_region
        _
      $region24: #{mlp_head.1} parent=11 // pred_fallthru
        _
      // Predicated region
      $region25: #{mlp_head.1} parent=11 // pred_check
        %p215 = pneg %p149
      $region26: #{mlp_head.1} parent=11 // pred_check_branch
        %217 = sbr.rel (%p215) target = $region28
      $region27: #{mlp_head.1} parent=11 // pred_region
        _
      $region28: #{mlp_head.1} parent=11 // pred_fallthru
        _
      // Predicated region
      $region29: #{mlp_head.1} parent=11 // pred_check
        %p218 = pneg %p170
      $region30: #{mlp_head.1} parent=11 // pred_check_branch
        %220 = sbr.rel (%p218) target = $region32
      $region31: #{mlp_head.1} parent=11 // pred_region
        _
      $region32: #{mlp_head.1} parent=11 // pred_fallthru
        _
    $region12: #{mlp_head.1} parent=5 // pred_fallthru
      _
    %p221 = scmp.lt.s32.totalorder %s13, 2
    // Predicated region
    $region33: #{mlp_head.1} parent=5 // pred_check
      %p222 = pneg %p221
    $region34: #{mlp_head.1} parent=5 // pred_check_branch
      %224 = sbr.rel (%p222) target = $region36
    $region35: #{mlp_head.1} parent=5 // pred_region
      // Predicated region
      $region37: #{mlp_head.1} parent=35 // pred_check
        %p225 = pneg %p33
      $region38: #{mlp_head.1} parent=35 // pred_check_branch
        %227 = sbr.rel (%p225) target = $region40
      $region39: #{mlp_head.1} parent=35 // pred_region
        %s228 = smul.u32 4, %s13
        %p229 = scmp.lt.s32.totalorder %s228, 7
        %s230 = scalar_select %p229, %s228, 7
        %s231 = smul.addr %s230, 8
        %s232 = scalar_lea.vmem %s0, %s231
        %s233 = smul.u32 4, %s13
      $region40: #{mlp_head.1} parent=35 // pred_fallthru
        _
      // Predicated region
      $region41: #{mlp_head.1} parent=35 // pred_check
        %p234 = pneg %p59
      $region42: #{mlp_head.1} parent=35 // pred_check_branch
        %236 = sbr.rel (%p234) target = $region44
      $region43: #{mlp_head.1} parent=35 // pred_region
        %s237 = smul.u32 64, %s13
        %p238 = scmp.lt.s32.totalorder %s237, 127
        %s239 = scalar_select %p238, %s237, 127
        %s240 = smul.addr %s239, 4
        %s241 = smul.addr %s240, 4
        %s242 = scalar_lea.vmem %s1, %s241
        %s243 = smul.u32 64, %s13
      $region44: #{mlp_head.1} parent=35 // pred_fallthru
        _
    $region36: #{mlp_head.1} parent=5 // pred_fallthru
      _
    %p244 = scmp.le.s32.totalorder 1, %s13
    %p245 = scmp.lt.s32.totalorder %s13, 3
    %p246 = pnand %p244, %p245
    %p247 = pneg %p246
    // Predicated region
    $region45: #{mlp_head.1} parent=5 // pred_check
      _
    $region46: #{mlp_head.1} parent=5 // pred_check_branch
      %249 = sbr.rel (%p246) target = $region48
    $region47: #{mlp_head.1} parent=5 // pred_region
      %s250 = ssub.s32 %s13, 1
      %s251 = smul.u32 4, %s18
      %p252 = scmp.lt.s32.totalorder %s251, 7
      %s253 = scalar_select %p252, %s251, 7
      %s254 = smul.addr %s253, 8
      %s255 = scalar_lea.vmem %s0, %s254
      %p256 = pneg %p39
      %p257 = pneg %p36
      %s258 = smul.u32 64, %s18
      %p259 = scmp.lt.s32.totalorder %s258, 127
      %s260 = scalar_select %p259, %s258, 127
      %s261 = smul.addr %s260, 4
      %s262 = smul.addr %s261, 4
      %s263 = scalar_lea.vmem %s1, %s262
      %p264 = pneg %p65
      %p265 = pneg %p62
      %p266 = pneg %p86
      %p267 = pneg %p83
      %p268 = pneg %p107
      %p269 = pneg %p104
      %p270 = pneg %p128
      %p271 = pneg %p125
      %p272 = pneg %p149
      %p273 = pneg %p146
      %p274 = pneg %p170
      %p275 = pneg %p167
      %p276 = pneg %p191
      %p277 = pneg %p188
      %s278 = smul.u32 4, %s18
      %p279 = scmp.lt.s32.totalorder %s278, 7
      %s280 = scalar_select %p279, %s278, 7
      %s281 = smul.addr %s280, 8
      %s282 = scalar_lea.vmem %s0, %s281
      %s283 = smul.u32 4, %s18
      %s284 = smul.u32 64, %s18
      %p285 = scmp.lt.s32.totalorder %s284, 127
      %s286 = scalar_select %p285, %s284, 127
      %s287 = smul.addr %s286, 4
      %s288 = smul.addr %s287, 4
      %s289 = scalar_lea.vmem %s1, %s288
      %s290 = smul.u32 64, %s18
      %p291 = scmp.eq.s32.totalorder %s18, 0
      // Predicated region
      $region49: #{mlp_head.1} parent=47 // pred_check
        %p292 = pneg %p291
      $region50: #{mlp_head.1} parent=47 // pred_check_branch
        %294 = sbr.rel (%p292) target = $region52
      $region51: #{mlp_head.1} parent=47 // pred_region
        %295 = vst [vmem:[#allocation2] sm:$0xff] 0.0
        %296 = vst [vmem:[#allocation2 + $0x8] sm:$0xff] 0.0
        %297 = vst [vmem:[#allocation2 + $0x10] sm:$0xff] 0.0
        %298 = vst [vmem:[#allocation2 + $0x18] sm:$0xff] 0.0
      $region52: #{mlp_head.1} parent=47 // pred_fallthru
        _
      %v299 = vld [vmem:[#allocation2] sm:$0xff]
      %v300 = vld [vmem:[#allocation2 + $0x8] sm:$0xff]
      %v301 = vld [vmem:[#allocation2 + $0x10] sm:$0xff]
      %v302 = vld [vmem:[#allocation2 + $0x18] sm:$0xff]
      %v303 = vld [vmem:[%s282] sm:$0xff]
      %v304 = vld [vmem:[%s282 + $0x8] sm:$0xff]
      %v305 = vld [vmem:[%s282 + $0x10] sm:$0xff]
      %v306 = vld [vmem:[%s282 + $0x18] sm:$0xff]
      %v307 = vpack.c.bf16 %v303, %v303
      %v308 = vpack.c.bf16 %v304, %v304
      %v309 = vpack.c.bf16 %v305, %v305
      %v310 = vpack.c.bf16 %v306, %v306
      %v311 = vld [vmem:[%s289] sm:$0xff]
      %v312 = vld [vmem:[%s289 + $0x8] sm:$0xff]
      %v313 = vld [vmem:[%s289 + $0x10] sm:$0xff]
      %v314 = vld [vmem:[%s289 + $0x18] sm:$0xff]
      %v315 = vld [vmem:[%s289 + $0x20] sm:$0xff]
      %v316 = vld [vmem:[%s289 + $0x28] sm:$0xff]
      %v317 = vld [vmem:[%s289 + $0x30] sm:$0xff]
      %v318 = vld [vmem:[%s289 + $0x38] sm:$0xff]
      %v319 = vld [vmem:[%s289 + $0x40] sm:$0xff]
      %v320 = vld [vmem:[%s289 + $0x48] sm:$0xff]
      %v321 = vld [vmem:[%s289 + $0x50] sm:$0xff]
      %v322 = vld [vmem:[%s289 + $0x58] sm:$0xff]
      %v323 = vld [vmem:[%s289 + $0x60] sm:$0xff]
      %v324 = vld [vmem:[%s289 + $0x68] sm:$0xff]
      %v325 = vld [vmem:[%s289 + $0x70] sm:$0xff]
      %v326 = vld [vmem:[%s289 + $0x78] sm:$0xff]
      %v327 = vld [vmem:[%s289 + $0x80] sm:$0xff]
      %v328 = vld [vmem:[%s289 + $0x88] sm:$0xff]
      %v329 = vld [vmem:[%s289 + $0x90] sm:$0xff]
      %v330 = vld [vmem:[%s289 + $0x98] sm:$0xff]
      %v331 = vld [vmem:[%s289 + $0xa0] sm:$0xff]
      %v332 = vld [vmem:[%s289 + $0xa8] sm:$0xff]
      %v333 = vld [vmem:[%s289 + $0xb0] sm:$0xff]
      %v334 = vld [vmem:[%s289 + $0xb8] sm:$0xff]
      %v335 = vld [vmem:[%s289 + $0xc0] sm:$0xff]
      %v336 = vld [vmem:[%s289 + $0xc8] sm:$0xff]
      %v337 = vld [vmem:[%s289 + $0xd0] sm:$0xff]
      %v338 = vld [vmem:[%s289 + $0xd8] sm:$0xff]
      %v339 = vld [vmem:[%s289 + $0xe0] sm:$0xff]
      %v340 = vld [vmem:[%s289 + $0xe8] sm:$0xff]
      %v341 = vld [vmem:[%s289 + $0xf0] sm:$0xff]
      %v342 = vld [vmem:[%s289 + $0xf8] sm:$0xff]
      %v343 = vld [vmem:[%s289 + $0x100] sm:$0xff]
      %v344 = vld [vmem:[%s289 + $0x108] sm:$0xff]
      %v345 = vld [vmem:[%s289 + $0x110] sm:$0xff]
      %v346 = vld [vmem:[%s289 + $0x118] sm:$0xff]
      %v347 = vld [vmem:[%s289 + $0x120] sm:$0xff]
      %v348 = vld [vmem:[%s289 + $0x128] sm:$0xff]
      %v349 = vld [vmem:[%s289 + $0x130] sm:$0xff]
      %v350 = vld [vmem:[%s289 + $0x138] sm:$0xff]
      %v351 = vld [vmem:[%s289 + $0x140] sm:$0xff]
      %v352 = vld [vmem:[%s289 + $0x148] sm:$0xff]
      %v353 = vld [vmem:[%s289 + $0x150] sm:$0xff]
      %v354 = vld [vmem:[%s289 + $0x158] sm:$0xff]
      %v355 = vld [vmem:[%s289 + $0x160] sm:$0xff]
      %v356 = vld [vmem:[%s289 + $0x168] sm:$0xff]
      %v357 = vld [vmem:[%s289 + $0x170] sm:$0xff]
      %v358 = vld [vmem:[%s289 + $0x178] sm:$0xff]
      %v359 = vld [vmem:[%s289 + $0x180] sm:$0xff]
      %v360 = vld [vmem:[%s289 + $0x188] sm:$0xff]
      %v361 = vld [vmem:[%s289 + $0x190] sm:$0xff]
      %v362 = vld [vmem:[%s289 + $0x198] sm:$0xff]
      %v363 = vld [vmem:[%s289 + $0x1a0] sm:$0xff]
      %v364 = vld [vmem:[%s289 + $0x1a8] sm:$0xff]
      %v365 = vld [vmem:[%s289 + $0x1b0] sm:$0xff]
      %v366 = vld [vmem:[%s289 + $0x1b8] sm:$0xff]
      %v367 = vld [vmem:[%s289 + $0x1c0] sm:$0xff]
      %v368 = vld [vmem:[%s289 + $0x1c8] sm:$0xff]
      %v369 = vld [vmem:[%s289 + $0x1d0] sm:$0xff]
      %v370 = vld [vmem:[%s289 + $0x1d8] sm:$0xff]
      %v371 = vld [vmem:[%s289 + $0x1e0] sm:$0xff]
      %v372 = vld [vmem:[%s289 + $0x1e8] sm:$0xff]
      %v373 = vld [vmem:[%s289 + $0x1f0] sm:$0xff]
      %v374 = vld [vmem:[%s289 + $0x1f8] sm:$0xff]
      %v375 = vld [vmem:[%s289 + $0x200] sm:$0xff]
      %v376 = vld [vmem:[%s289 + $0x208] sm:$0xff]
      %v377 = vld [vmem:[%s289 + $0x210] sm:$0xff]
      %v378 = vld [vmem:[%s289 + $0x218] sm:$0xff]
      %v379 = vld [vmem:[%s289 + $0x220] sm:$0xff]
      %v380 = vld [vmem:[%s289 + $0x228] sm:$0xff]
      %v381 = vld [vmem:[%s289 + $0x230] sm:$0xff]
      %v382 = vld [vmem:[%s289 + $0x238] sm:$0xff]
      %v383 = vld [vmem:[%s289 + $0x240] sm:$0xff]
      %v384 = vld [vmem:[%s289 + $0x248] sm:$0xff]
      %v385 = vld [vmem:[%s289 + $0x250] sm:$0xff]
      %v386 = vld [vmem:[%s289 + $0x258] sm:$0xff]
      %v387 = vld [vmem:[%s289 + $0x260] sm:$0xff]
      %v388 = vld [vmem:[%s289 + $0x268] sm:$0xff]
      %v389 = vld [vmem:[%s289 + $0x270] sm:$0xff]
      %v390 = vld [vmem:[%s289 + $0x278] sm:$0xff]
      %v391 = vld [vmem:[%s289 + $0x280] sm:$0xff]
      %v392 = vld [vmem:[%s289 + $0x288] sm:$0xff]
      %v393 = vld [vmem:[%s289 + $0x290] sm:$0xff]
      %v394 = vld [vmem:[%s289 + $0x298] sm:$0xff]
      %v395 = vld [vmem:[%s289 + $0x2a0] sm:$0xff]
      %v396 = vld [vmem:[%s289 + $0x2a8] sm:$0xff]
      %v397 = vld [vmem:[%s289 + $0x2b0] sm:$0xff]
      %v398 = vld [vmem:[%s289 + $0x2b8] sm:$0xff]
      %v399 = vld [vmem:[%s289 + $0x2c0] sm:$0xff]
      %v400 = vld [vmem:[%s289 + $0x2c8] sm:$0xff]
      %v401 = vld [vmem:[%s289 + $0x2d0] sm:$0xff]
      %v402 = vld [vmem:[%s289 + $0x2d8] sm:$0xff]
      %v403 = vld [vmem:[%s289 + $0x2e0] sm:$0xff]
      %v404 = vld [vmem:[%s289 + $0x2e8] sm:$0xff]
      %v405 = vld [vmem:[%s289 + $0x2f0] sm:$0xff]
      %v406 = vld [vmem:[%s289 + $0x2f8] sm:$0xff]
      %v407 = vld [vmem:[%s289 + $0x300] sm:$0xff]
      %v408 = vld [vmem:[%s289 + $0x308] sm:$0xff]
      %v409 = vld [vmem:[%s289 + $0x310] sm:$0xff]
      %v410 = vld [vmem:[%s289 + $0x318] sm:$0xff]
      %v411 = vld [vmem:[%s289 + $0x320] sm:$0xff]
      %v412 = vld [vmem:[%s289 + $0x328] sm:$0xff]
      %v413 = vld [vmem:[%s289 + $0x330] sm:$0xff]
      %v414 = vld [vmem:[%s289 + $0x338] sm:$0xff]
      %v415 = vld [vmem:[%s289 + $0x340] sm:$0xff]
      %v416 = vld [vmem:[%s289 + $0x348] sm:$0xff]
      %v417 = vld [vmem:[%s289 + $0x350] sm:$0xff]
      %v418 = vld [vmem:[%s289 + $0x358] sm:$0xff]
      %v419 = vld [vmem:[%s289 + $0x360] sm:$0xff]
      %v420 = vld [vmem:[%s289 + $0x368] sm:$0xff]
      %v421 = vld [vmem:[%s289 + $0x370] sm:$0xff]
      %v422 = vld [vmem:[%s289 + $0x378] sm:$0xff]
      %v423 = vld [vmem:[%s289 + $0x380] sm:$0xff]
      %v424 = vld [vmem:[%s289 + $0x388] sm:$0xff]
      %v425 = vld [vmem:[%s289 + $0x390] sm:$0xff]
      %v426 = vld [vmem:[%s289 + $0x398] sm:$0xff]
      %v427 = vld [vmem:[%s289 + $0x3a0] sm:$0xff]
      %v428 = vld [vmem:[%s289 + $0x3a8] sm:$0xff]
      %v429 = vld [vmem:[%s289 + $0x3b0] sm:$0xff]
      %v430 = vld [vmem:[%s289 + $0x3b8] sm:$0xff]
      %v431 = vld [vmem:[%s289 + $0x3c0] sm:$0xff]
      %v432 = vld [vmem:[%s289 + $0x3c8] sm:$0xff]
      %v433 = vld [vmem:[%s289 + $0x3d0] sm:$0xff]
      %v434 = vld [vmem:[%s289 + $0x3d8] sm:$0xff]
      %v435 = vld [vmem:[%s289 + $0x3e0] sm:$0xff]
      %v436 = vld [vmem:[%s289 + $0x3e8] sm:$0xff]
      %v437 = vld [vmem:[%s289 + $0x3f0] sm:$0xff]
      %v438 = vld [vmem:[%s289 + $0x3f8] sm:$0xff]
      %v567 = vunpack.c.l.b16 %v311
      %v568 = vunpack.c.h.b16 %v311
      %v569 = vunpack.c.l.b16 %v312
      %v570 = vunpack.c.h.b16 %v312
      %v571 = vunpack.c.l.b16 %v313
      %v572 = vunpack.c.h.b16 %v313
      %v573 = vunpack.c.l.b16 %v314
      %v574 = vunpack.c.h.b16 %v314
      %v575 = vunpack.c.l.b16 %v315
      %v576 = vunpack.c.h.b16 %v315
      %v577 = vunpack.c.l.b16 %v316
      %v578 = vunpack.c.h.b16 %v316
      %v579 = vunpack.c.l.b16 %v317
      %v580 = vunpack.c.h.b16 %v317
      %v581 = vunpack.c.l.b16 %v318
      %v582 = vunpack.c.h.b16 %v318
      %v583 = vunpack.c.l.b16 %v319
      %v584 = vunpack.c.h.b16 %v319
      %v585 = vunpack.c.l.b16 %v320
      %v586 = vunpack.c.h.b16 %v320
      %v587 = vunpack.c.l.b16 %v321
      %v588 = vunpack.c.h.b16 %v321
      %v589 = vunpack.c.l.b16 %v322
      %v590 = vunpack.c.h.b16 %v322
      %v591 = vunpack.c.l.b16 %v323
      %v592 = vunpack.c.h.b16 %v323
      %v593 = vunpack.c.l.b16 %v324
      %v594 = vunpack.c.h.b16 %v324
      %v595 = vunpack.c.l.b16 %v325
      %v596 = vunpack.c.h.b16 %v325
      %v597 = vunpack.c.l.b16 %v326
      %v598 = vunpack.c.h.b16 %v326
      %v599 = vunpack.c.l.b16 %v327
      %v600 = vunpack.c.h.b16 %v327
      %v601 = vunpack.c.l.b16 %v328
      %v602 = vunpack.c.h.b16 %v328
      %v603 = vunpack.c.l.b16 %v329
      %v604 = vunpack.c.h.b16 %v329
      %v605 = vunpack.c.l.b16 %v330
      %v606 = vunpack.c.h.b16 %v330
      %v607 = vunpack.c.l.b16 %v331
      %v608 = vunpack.c.h.b16 %v331
      %v609 = vunpack.c.l.b16 %v332
      %v610 = vunpack.c.h.b16 %v332
      %v611 = vunpack.c.l.b16 %v333
      %v612 = vunpack.c.h.b16 %v333
      %v613 = vunpack.c.l.b16 %v334
      %v614 = vunpack.c.h.b16 %v334
      %v615 = vunpack.c.l.b16 %v335
      %v616 = vunpack.c.h.b16 %v335
      %v617 = vunpack.c.l.b16 %v336
      %v618 = vunpack.c.h.b16 %v336
      %v619 = vunpack.c.l.b16 %v337
      %v620 = vunpack.c.h.b16 %v337
      %v621 = vunpack.c.l.b16 %v338
      %v622 = vunpack.c.h.b16 %v338
      %v623 = vunpack.c.l.b16 %v339
      %v624 = vunpack.c.h.b16 %v339
      %v625 = vunpack.c.l.b16 %v340
      %v626 = vunpack.c.h.b16 %v340
      %v627 = vunpack.c.l.b16 %v341
      %v628 = vunpack.c.h.b16 %v341
      %v629 = vunpack.c.l.b16 %v342
      %v630 = vunpack.c.h.b16 %v342
      %v631 = vunpack.c.l.b16 %v343
      %v632 = vunpack.c.h.b16 %v343
      %v633 = vunpack.c.l.b16 %v344
      %v634 = vunpack.c.h.b16 %v344
      %v635 = vunpack.c.l.b16 %v345
      %v636 = vunpack.c.h.b16 %v345
      %v637 = vunpack.c.l.b16 %v346
      %v638 = vunpack.c.h.b16 %v346
      %v639 = vunpack.c.l.b16 %v347
      %v640 = vunpack.c.h.b16 %v347
      %v641 = vunpack.c.l.b16 %v348
      %v642 = vunpack.c.h.b16 %v348
      %v643 = vunpack.c.l.b16 %v349
      %v644 = vunpack.c.h.b16 %v349
      %v645 = vunpack.c.l.b16 %v350
      %v646 = vunpack.c.h.b16 %v350
      %v647 = vunpack.c.l.b16 %v351
      %v648 = vunpack.c.h.b16 %v351
      %v649 = vunpack.c.l.b16 %v352
      %v650 = vunpack.c.h.b16 %v352
      %v651 = vunpack.c.l.b16 %v353
      %v652 = vunpack.c.h.b16 %v353
      %v653 = vunpack.c.l.b16 %v354
      %v654 = vunpack.c.h.b16 %v354
      %v655 = vunpack.c.l.b16 %v355
      %v656 = vunpack.c.h.b16 %v355
      %v657 = vunpack.c.l.b16 %v356
      %v658 = vunpack.c.h.b16 %v356
      %v659 = vunpack.c.l.b16 %v357
      %v660 = vunpack.c.h.b16 %v357
      %v661 = vunpack.c.l.b16 %v358
      %v662 = vunpack.c.h.b16 %v358
      %v663 = vunpack.c.l.b16 %v359
      %v664 = vunpack.c.h.b16 %v359
      %v665 = vunpack.c.l.b16 %v360
      %v666 = vunpack.c.h.b16 %v360
      %v667 = vunpack.c.l.b16 %v361
      %v668 = vunpack.c.h.b16 %v361
      %v669 = vunpack.c.l.b16 %v362
      %v670 = vunpack.c.h.b16 %v362
      %v671 = vunpack.c.l.b16 %v363
      %v672 = vunpack.c.h.b16 %v363
      %v673 = vunpack.c.l.b16 %v364
      %v674 = vunpack.c.h.b16 %v364
      %v675 = vunpack.c.l.b16 %v365
      %v676 = vunpack.c.h.b16 %v365
      %v677 = vunpack.c.l.b16 %v366
      %v678 = vunpack.c.h.b16 %v366
      %v679 = vunpack.c.l.b16 %v367
      %v680 = vunpack.c.h.b16 %v367
      %v681 = vunpack.c.l.b16 %v368
      %v682 = vunpack.c.h.b16 %v368
      %v683 = vunpack.c.l.b16 %v369
      %v684 = vunpack.c.h.b16 %v369
      %v685 = vunpack.c.l.b16 %v370
      %v686 = vunpack.c.h.b16 %v370
      %v687 = vunpack.c.l.b16 %v371
      %v688 = vunpack.c.h.b16 %v371
      %v689 = vunpack.c.l.b16 %v372
      %v690 = vunpack.c.h.b16 %v372
      %v691 = vunpack.c.l.b16 %v373
      %v692 = vunpack.c.h.b16 %v373
      %v693 = vunpack.c.l.b16 %v374
      %v694 = vunpack.c.h.b16 %v374
      %v695 = vunpack.c.l.b16 %v375
      %v696 = vunpack.c.h.b16 %v375
      %v697 = vunpack.c.l.b16 %v376
      %v698 = vunpack.c.h.b16 %v376
      %v699 = vunpack.c.l.b16 %v377
      %v700 = vunpack.c.h.b16 %v377
      %v701 = vunpack.c.l.b16 %v378
      %v702 = vunpack.c.h.b16 %v378
      %v703 = vunpack.c.l.b16 %v379
      %v704 = vunpack.c.h.b16 %v379
      %v705 = vunpack.c.l.b16 %v380
      %v706 = vunpack.c.h.b16 %v380
      %v707 = vunpack.c.l.b16 %v381
      %v708 = vunpack.c.h.b16 %v381
      %v709 = vunpack.c.l.b16 %v382
      %v710 = vunpack.c.h.b16 %v382
      %v711 = vunpack.c.l.b16 %v383
      %v712 = vunpack.c.h.b16 %v383
      %v713 = vunpack.c.l.b16 %v384
      %v714 = vunpack.c.h.b16 %v384
      %v715 = vunpack.c.l.b16 %v385
      %v716 = vunpack.c.h.b16 %v385
      %v717 = vunpack.c.l.b16 %v386
      %v718 = vunpack.c.h.b16 %v386
      %v719 = vunpack.c.l.b16 %v387
      %v720 = vunpack.c.h.b16 %v387
      %v721 = vunpack.c.l.b16 %v388
      %v722 = vunpack.c.h.b16 %v388
      %v723 = vunpack.c.l.b16 %v389
      %v724 = vunpack.c.h.b16 %v389
      %v725 = vunpack.c.l.b16 %v390
      %v726 = vunpack.c.h.b16 %v390
      %v727 = vunpack.c.l.b16 %v391
      %v728 = vunpack.c.h.b16 %v391
      %v729 = vunpack.c.l.b16 %v392
      %v730 = vunpack.c.h.b16 %v392
      %v731 = vunpack.c.l.b16 %v393
      %v732 = vunpack.c.h.b16 %v393
      %v733 = vunpack.c.l.b16 %v394
      %v734 = vunpack.c.h.b16 %v394
      %v735 = vunpack.c.l.b16 %v395
      %v736 = vunpack.c.h.b16 %v395
      %v737 = vunpack.c.l.b16 %v396
      %v738 = vunpack.c.h.b16 %v396
      %v739 = vunpack.c.l.b16 %v397
      %v740 = vunpack.c.h.b16 %v397
      %v741 = vunpack.c.l.b16 %v398
      %v742 = vunpack.c.h.b16 %v398
      %v743 = vunpack.c.l.b16 %v399
      %v744 = vunpack.c.h.b16 %v399
      %v745 = vunpack.c.l.b16 %v400
      %v746 = vunpack.c.h.b16 %v400
      %v747 = vunpack.c.l.b16 %v401
      %v748 = vunpack.c.h.b16 %v401
      %v749 = vunpack.c.l.b16 %v402
      %v750 = vunpack.c.h.b16 %v402
      %v751 = vunpack.c.l.b16 %v403
      %v752 = vunpack.c.h.b16 %v403
      %v753 = vunpack.c.l.b16 %v404
      %v754 = vunpack.c.h.b16 %v404
      %v755 = vunpack.c.l.b16 %v405
      %v756 = vunpack.c.h.b16 %v405
      %v757 = vunpack.c.l.b16 %v406
      %v758 = vunpack.c.h.b16 %v406
      %v759 = vunpack.c.l.b16 %v407
      %v760 = vunpack.c.h.b16 %v407
      %v761 = vunpack.c.l.b16 %v408
      %v762 = vunpack.c.h.b16 %v408
      %v763 = vunpack.c.l.b16 %v409
      %v764 = vunpack.c.h.b16 %v409
      %v765 = vunpack.c.l.b16 %v410
      %v766 = vunpack.c.h.b16 %v410
      %v767 = vunpack.c.l.b16 %v411
      %v768 = vunpack.c.h.b16 %v411
      %v769 = vunpack.c.l.b16 %v412
      %v770 = vunpack.c.h.b16 %v412
      %v771 = vunpack.c.l.b16 %v413
      %v772 = vunpack.c.h.b16 %v413
      %v773 = vunpack.c.l.b16 %v414
      %v774 = vunpack.c.h.b16 %v414
      %v775 = vunpack.c.l.b16 %v415
      %v776 = vunpack.c.h.b16 %v415
      %v777 = vunpack.c.l.b16 %v416
      %v778 = vunpack.c.h.b16 %v416
      %v779 = vunpack.c.l.b16 %v417
      %v780 = vunpack.c.h.b16 %v417
      %v781 = vunpack.c.l.b16 %v418
      %v782 = vunpack.c.h.b16 %v418
      %v783 = vunpack.c.l.b16 %v419
      %v784 = vunpack.c.h.b16 %v419
      %v785 = vunpack.c.l.b16 %v420
      %v786 = vunpack.c.h.b16 %v420
      %v787 = vunpack.c.l.b16 %v421
      %v788 = vunpack.c.h.b16 %v421
      %v789 = vunpack.c.l.b16 %v422
      %v790 = vunpack.c.h.b16 %v422
      %v791 = vunpack.c.l.b16 %v423
      %v792 = vunpack.c.h.b16 %v423
      %v793 = vunpack.c.l.b16 %v424
      %v794 = vunpack.c.h.b16 %v424
      %v795 = vunpack.c.l.b16 %v425
      %v796 = vunpack.c.h.b16 %v425
      %v797 = vunpack.c.l.b16 %v426
      %v798 = vunpack.c.h.b16 %v426
      %v799 = vunpack.c.l.b16 %v427
      %v800 = vunpack.c.h.b16 %v427
      %v801 = vunpack.c.l.b16 %v428
      %v802 = vunpack.c.h.b16 %v428
      %v803 = vunpack.c.l.b16 %v429
      %v804 = vunpack.c.h.b16 %v429
      %v805 = vunpack.c.l.b16 %v430
      %v806 = vunpack.c.h.b16 %v430
      %v807 = vunpack.c.l.b16 %v431
      %v808 = vunpack.c.h.b16 %v431
      %v809 = vunpack.c.l.b16 %v432
      %v810 = vunpack.c.h.b16 %v432
      %v811 = vunpack.c.l.b16 %v433
      %v812 = vunpack.c.h.b16 %v433
      %v813 = vunpack.c.l.b16 %v434
      %v814 = vunpack.c.h.b16 %v434
      %v815 = vunpack.c.l.b16 %v435
      %v816 = vunpack.c.h.b16 %v435
      %v817 = vunpack.c.l.b16 %v436
      %v818 = vunpack.c.h.b16 %v436
      %v819 = vunpack.c.l.b16 %v437
      %v820 = vunpack.c.h.b16 %v437
      %v821 = vunpack.c.l.b16 %v438
      %v822 = vunpack.c.h.b16 %v438
      %v823 = vpack.c.b16 %v571, %v567
      %v824 = vpack.c.b16 %v572, %v568
      %v825 = vpack.c.b16 %v573, %v569
      %v826 = vpack.c.b16 %v574, %v570
      %v827 = vpack.c.b16 %v579, %v575
      %v828 = vpack.c.b16 %v580, %v576
      %v829 = vpack.c.b16 %v581, %v577
      %v830 = vpack.c.b16 %v582, %v578
      %v831 = vpack.c.b16 %v587, %v583
      %v832 = vpack.c.b16 %v588, %v584
      %v833 = vpack.c.b16 %v589, %v585
      %v834 = vpack.c.b16 %v590, %v586
      %v835 = vpack.c.b16 %v595, %v591
      %v836 = vpack.c.b16 %v596, %v592
      %v837 = vpack.c.b16 %v597, %v593
      %v838 = vpack.c.b16 %v598, %v594
      %v839 = vpack.c.b16 %v603, %v599
      %v840 = vpack.c.b16 %v604, %v600
      %v841 = vpack.c.b16 %v605, %v601
      %v842 = vpack.c.b16 %v606, %v602
      %v843 = vpack.c.b16 %v611, %v607
      %v844 = vpack.c.b16 %v612, %v608
      %v845 = vpack.c.b16 %v613, %v609
      %v846 = vpack.c.b16 %v614, %v610
      %v847 = vpack.c.b16 %v619, %v615
      %v848 = vpack.c.b16 %v620, %v616
      %v849 = vpack.c.b16 %v621, %v617
      %v850 = vpack.c.b16 %v622, %v618
      %v851 = vpack.c.b16 %v627, %v623
      %v852 = vpack.c.b16 %v628, %v624
      %v853 = vpack.c.b16 %v629, %v625
      %v854 = vpack.c.b16 %v630, %v626
      %v855 = vpack.c.b16 %v635, %v631
      %v856 = vpack.c.b16 %v636, %v632
      %v857 = vpack.c.b16 %v637, %v633
      %v858 = vpack.c.b16 %v638, %v634
      %v859 = vpack.c.b16 %v643, %v639
      %v860 = vpack.c.b16 %v644, %v640
      %v861 = vpack.c.b16 %v645, %v641
      %v862 = vpack.c.b16 %v646, %v642
      %v863 = vpack.c.b16 %v651, %v647
      %v864 = vpack.c.b16 %v652, %v648
      %v865 = vpack.c.b16 %v653, %v649
      %v866 = vpack.c.b16 %v654, %v650
      %v867 = vpack.c.b16 %v659, %v655
      %v868 = vpack.c.b16 %v660, %v656
      %v869 = vpack.c.b16 %v661, %v657
      %v870 = vpack.c.b16 %v662, %v658
      %v871 = vpack.c.b16 %v667, %v663
      %v872 = vpack.c.b16 %v668, %v664
      %v873 = vpack.c.b16 %v669, %v665
      %v874 = vpack.c.b16 %v670, %v666
      %v875 = vpack.c.b16 %v675, %v671
      %v876 = vpack.c.b16 %v676, %v672
      %v877 = vpack.c.b16 %v677, %v673
      %v878 = vpack.c.b16 %v678, %v674
      %v879 = vpack.c.b16 %v683, %v679
      %v880 = vpack.c.b16 %v684, %v680
      %v881 = vpack.c.b16 %v685, %v681
      %v882 = vpack.c.b16 %v686, %v682
      %v883 = vpack.c.b16 %v691, %v687
      %v884 = vpack.c.b16 %v692, %v688
      %v885 = vpack.c.b16 %v693, %v689
      %v886 = vpack.c.b16 %v694, %v690
      %v887 = vpack.c.b16 %v699, %v695
      %v888 = vpack.c.b16 %v700, %v696
      %v889 = vpack.c.b16 %v701, %v697
      %v890 = vpack.c.b16 %v702, %v698
      %v891 = vpack.c.b16 %v707, %v703
      %v892 = vpack.c.b16 %v708, %v704
      %v893 = vpack.c.b16 %v709, %v705
      %v894 = vpack.c.b16 %v710, %v706
      %v895 = vpack.c.b16 %v715, %v711
      %v896 = vpack.c.b16 %v716, %v712
      %v897 = vpack.c.b16 %v717, %v713
      %v898 = vpack.c.b16 %v718, %v714
      %v899 = vpack.c.b16 %v723, %v719
      %v900 = vpack.c.b16 %v724, %v720
      %v901 = vpack.c.b16 %v725, %v721
      %v902 = vpack.c.b16 %v726, %v722
      %v903 = vpack.c.b16 %v731, %v727
      %v904 = vpack.c.b16 %v732, %v728
      %v905 = vpack.c.b16 %v733, %v729
      %v906 = vpack.c.b16 %v734, %v730
      %v907 = vpack.c.b16 %v739, %v735
      %v908 = vpack.c.b16 %v740, %v736
      %v909 = vpack.c.b16 %v741, %v737
      %v910 = vpack.c.b16 %v742, %v738
      %v911 = vpack.c.b16 %v747, %v743
      %v912 = vpack.c.b16 %v748, %v744
      %v913 = vpack.c.b16 %v749, %v745
      %v914 = vpack.c.b16 %v750, %v746
      %v915 = vpack.c.b16 %v755, %v751
      %v916 = vpack.c.b16 %v756, %v752
      %v917 = vpack.c.b16 %v757, %v753
      %v918 = vpack.c.b16 %v758, %v754
      %v919 = vpack.c.b16 %v763, %v759
      %v920 = vpack.c.b16 %v764, %v760
      %v921 = vpack.c.b16 %v765, %v761
      %v922 = vpack.c.b16 %v766, %v762
      %v923 = vpack.c.b16 %v771, %v767
      %v924 = vpack.c.b16 %v772, %v768
      %v925 = vpack.c.b16 %v773, %v769
      %v926 = vpack.c.b16 %v774, %v770
      %v927 = vpack.c.b16 %v779, %v775
      %v928 = vpack.c.b16 %v780, %v776
      %v929 = vpack.c.b16 %v781, %v777
      %v930 = vpack.c.b16 %v782, %v778
      %v931 = vpack.c.b16 %v787, %v783
      %v932 = vpack.c.b16 %v788, %v784
      %v933 = vpack.c.b16 %v789, %v785
      %v934 = vpack.c.b16 %v790, %v786
      %v935 = vpack.c.b16 %v795, %v791
      %v936 = vpack.c.b16 %v796, %v792
      %v937 = vpack.c.b16 %v797, %v793
      %v938 = vpack.c.b16 %v798, %v794
      %v939 = vpack.c.b16 %v803, %v799
      %v940 = vpack.c.b16 %v804, %v800
      %v941 = vpack.c.b16 %v805, %v801
      %v942 = vpack.c.b16 %v806, %v802
      %v943 = vpack.c.b16 %v811, %v807
      %v944 = vpack.c.b16 %v812, %v808
      %v945 = vpack.c.b16 %v813, %v809
      %v946 = vpack.c.b16 %v814, %v810
      %v947 = vpack.c.b16 %v819, %v815
      %v948 = vpack.c.b16 %v820, %v816
      %v949 = vpack.c.b16 %v821, %v817
      %v950 = vpack.c.b16 %v822, %v818
      %1079 = vmatpush.bf16.msra.mxu0 %v851
      %1080 = vmatpush.bf16.msra.mxu0 %v847
      %1081 = vmatpush.bf16.msra.mxu0 %v843
      %1082 = vmatpush.bf16.msra.mxu0 %v839
      %1083 = vmatpush.bf16.msra.mxu0 %v835
      %1084 = vmatpush.bf16.msra.mxu0 %v831
      %1085 = vmatpush.bf16.msra.mxu0 %v827
      %1086 = vmatpush.bf16.msra.mxu0 %v823
      %1087 = vmatmul.bf16.gmra.mxu0 %v307
      %v1088 = vpop.f32.mrf.mxu0
      %v1089 = vadd.f32 0.0, %v1088
      %v1090 = vpop.f32.mrf.mxu0
      %1091 = vdwg.mxu0
      %1092 = vmatpush.bf16.msra.mxu0 %v883
      %1093 = vmatpush.bf16.msra.mxu0 %v879
      %1094 = vmatpush.bf16.msra.mxu0 %v875
      %1095 = vmatpush.bf16.msra.mxu0 %v871
      %1096 = vmatpush.bf16.msra.mxu0 %v867
      %1097 = vmatpush.bf16.msra.mxu0 %v863
      %1098 = vmatpush.bf16.msra.mxu0 %v859
      %1099 = vmatpush.bf16.msra.mxu0 %v855
      %1100 = vmatmul.bf16.gmra.mxu0 %v308
      %v1101 = vpop.f32.mrf.mxu0
      %v1102 = vadd.f32 %v1089, %v1101
      %v1103 = vpop.f32.mrf.mxu0
      %1104 = vdwg.mxu0
      %1105 = vmatpush.bf16.msra.mxu0 %v915
      %1106 = vmatpush.bf16.msra.mxu0 %v911
      %1107 = vmatpush.bf16.msra.mxu0 %v907
      %1108 = vmatpush.bf16.msra.mxu0 %v903
      %1109 = vmatpush.bf16.msra.mxu0 %v899
      %1110 = vmatpush.bf16.msra.mxu0 %v895
      %1111 = vmatpush.bf16.msra.mxu0 %v891
      %1112 = vmatpush.bf16.msra.mxu0 %v887
      %1113 = vmatmul.bf16.gmra.mxu0 %v309
      %v1114 = vpop.f32.mrf.mxu0
      %v1115 = vadd.f32 %v1102, %v1114
      %v1116 = vpop.f32.mrf.mxu0
      %1117 = vdwg.mxu0
      %1118 = vmatpush.bf16.msra.mxu0 %v947
      %1119 = vmatpush.bf16.msra.mxu0 %v943
      %1120 = vmatpush.bf16.msra.mxu0 %v939
      %1121 = vmatpush.bf16.msra.mxu0 %v935
      %1122 = vmatpush.bf16.msra.mxu0 %v931
      %1123 = vmatpush.bf16.msra.mxu0 %v927
      %1124 = vmatpush.bf16.msra.mxu0 %v923
      %1125 = vmatpush.bf16.msra.mxu0 %v919
      %1126 = vmatmul.bf16.gmra.mxu0 %v310
      %v1127 = vpop.f32.mrf.mxu0
      %v1128 = vadd.f32 %v1115, %v1127
      %v1129 = vpop.f32.mrf.mxu0
      %1130 = vdwg.mxu0
      %1131 = vmatpush.bf16.msra.mxu0 %v852
      %1132 = vmatpush.bf16.msra.mxu0 %v848
      %1133 = vmatpush.bf16.msra.mxu0 %v844
      %1134 = vmatpush.bf16.msra.mxu0 %v840
      %1135 = vmatpush.bf16.msra.mxu0 %v836
      %1136 = vmatpush.bf16.msra.mxu0 %v832
      %1137 = vmatpush.bf16.msra.mxu0 %v828
      %1138 = vmatpush.bf16.msra.mxu0 %v824
      %1139 = vmatmul.bf16.gmra.mxu0 %v307
      %v1140 = vpop.f32.mrf.mxu0
      %v1141 = vadd.f32 0.0, %v1140
      %v1142 = vpop.f32.mrf.mxu0
      %1143 = vdwg.mxu0
      %1144 = vmatpush.bf16.msra.mxu0 %v884
      %1145 = vmatpush.bf16.msra.mxu0 %v880
      %1146 = vmatpush.bf16.msra.mxu0 %v876
      %1147 = vmatpush.bf16.msra.mxu0 %v872
      %1148 = vmatpush.bf16.msra.mxu0 %v868
      %1149 = vmatpush.bf16.msra.mxu0 %v864
      %1150 = vmatpush.bf16.msra.mxu0 %v860
      %1151 = vmatpush.bf16.msra.mxu0 %v856
      %1152 = vmatmul.bf16.gmra.mxu0 %v308
      %v1153 = vpop.f32.mrf.mxu0
      %v1154 = vadd.f32 %v1141, %v1153
      %v1155 = vpop.f32.mrf.mxu0
      %1156 = vdwg.mxu0
      %1157 = vmatpush.bf16.msra.mxu0 %v916
      %1158 = vmatpush.bf16.msra.mxu0 %v912
      %1159 = vmatpush.bf16.msra.mxu0 %v908
      %1160 = vmatpush.bf16.msra.mxu0 %v904
      %1161 = vmatpush.bf16.msra.mxu0 %v900
      %1162 = vmatpush.bf16.msra.mxu0 %v896
      %1163 = vmatpush.bf16.msra.mxu0 %v892
      %1164 = vmatpush.bf16.msra.mxu0 %v888
      %1165 = vmatmul.bf16.gmra.mxu0 %v309
      %v1166 = vpop.f32.mrf.mxu0
      %v1167 = vadd.f32 %v1154, %v1166
      %v1168 = vpop.f32.mrf.mxu0
      %1169 = vdwg.mxu0
      %1170 = vmatpush.bf16.msra.mxu0 %v948
      %1171 = vmatpush.bf16.msra.mxu0 %v944
      %1172 = vmatpush.bf16.msra.mxu0 %v940
      %1173 = vmatpush.bf16.msra.mxu0 %v936
      %1174 = vmatpush.bf16.msra.mxu0 %v932
      %1175 = vmatpush.bf16.msra.mxu0 %v928
      %1176 = vmatpush.bf16.msra.mxu0 %v924
      %1177 = vmatpush.bf16.msra.mxu0 %v920
      %1178 = vmatmul.bf16.gmra.mxu0 %v310
      %v1179 = vpop.f32.mrf.mxu0
      %v1180 = vadd.f32 %v1167, %v1179
      %v1181 = vpop.f32.mrf.mxu0
      %1182 = vdwg.mxu0
      %1183 = vmatpush.bf16.msra.mxu0 %v853
      %1184 = vmatpush.bf16.msra.mxu0 %v849
      %1185 = vmatpush.bf16.msra.mxu0 %v845
      %1186 = vmatpush.bf16.msra.mxu0 %v841
      %1187 = vmatpush.bf16.msra.mxu0 %v837
      %1188 = vmatpush.bf16.msra.mxu0 %v833
      %1189 = vmatpush.bf16.msra.mxu0 %v829
      %1190 = vmatpush.bf16.msra.mxu0 %v825
      %1191 = vmatmul.bf16.gmra.mxu0 %v307
      %v1192 = vpop.f32.mrf.mxu0
      %v1193 = vadd.f32 0.0, %v1192
      %v1194 = vpop.f32.mrf.mxu0
      %1195 = vdwg.mxu0
      %1196 = vmatpush.bf16.msra.mxu0 %v885
      %1197 = vmatpush.bf16.msra.mxu0 %v881
      %1198 = vmatpush.bf16.msra.mxu0 %v877
      %1199 = vmatpush.bf16.msra.mxu0 %v873
      %1200 = vmatpush.bf16.msra.mxu0 %v869
      %1201 = vmatpush.bf16.msra.mxu0 %v865
      %1202 = vmatpush.bf16.msra.mxu0 %v861
      %1203 = vmatpush.bf16.msra.mxu0 %v857
      %1204 = vmatmul.bf16.gmra.mxu0 %v308
      %v1205 = vpop.f32.mrf.mxu0
      %v1206 = vadd.f32 %v1193, %v1205
      %v1207 = vpop.f32.mrf.mxu0
      %1208 = vdwg.mxu0
      %1209 = vmatpush.bf16.msra.mxu0 %v917
      %1210 = vmatpush.bf16.msra.mxu0 %v913
      %1211 = vmatpush.bf16.msra.mxu0 %v909
      %1212 = vmatpush.bf16.msra.mxu0 %v905
      %1213 = vmatpush.bf16.msra.mxu0 %v901
      %1214 = vmatpush.bf16.msra.mxu0 %v897
      %1215 = vmatpush.bf16.msra.mxu0 %v893
      %1216 = vmatpush.bf16.msra.mxu0 %v889
      %1217 = vmatmul.bf16.gmra.mxu0 %v309
      %v1218 = vpop.f32.mrf.mxu0
      %v1219 = vadd.f32 %v1206, %v1218
      %v1220 = vpop.f32.mrf.mxu0
      %1221 = vdwg.mxu0
      %1222 = vmatpush.bf16.msra.mxu0 %v949
      %1223 = vmatpush.bf16.msra.mxu0 %v945
      %1224 = vmatpush.bf16.msra.mxu0 %v941
      %1225 = vmatpush.bf16.msra.mxu0 %v937
      %1226 = vmatpush.bf16.msra.mxu0 %v933
      %1227 = vmatpush.bf16.msra.mxu0 %v929
      %1228 = vmatpush.bf16.msra.mxu0 %v925
      %1229 = vmatpush.bf16.msra.mxu0 %v921
      %1230 = vmatmul.bf16.gmra.mxu0 %v310
      %v1231 = vpop.f32.mrf.mxu0
      %v1232 = vadd.f32 %v1219, %v1231
      %v1233 = vpop.f32.mrf.mxu0
      %1234 = vdwg.mxu0
      %1235 = vmatpush.bf16.msra.mxu0 %v854
      %1236 = vmatpush.bf16.msra.mxu0 %v850
      %1237 = vmatpush.bf16.msra.mxu0 %v846
      %1238 = vmatpush.bf16.msra.mxu0 %v842
      %1239 = vmatpush.bf16.msra.mxu0 %v838
      %1240 = vmatpush.bf16.msra.mxu0 %v834
      %1241 = vmatpush.bf16.msra.mxu0 %v830
      %1242 = vmatpush.bf16.msra.mxu0 %v826
      %1243 = vmatmul.bf16.gmra.mxu0 %v307
      %v1244 = vpop.f32.mrf.mxu0
      %v1245 = vadd.f32 0.0, %v1244
      %v1246 = vpop.f32.mrf.mxu0
      %1247 = vdwg.mxu0
      %1248 = vmatpush.bf16.msra.mxu0 %v886
      %1249 = vmatpush.bf16.msra.mxu0 %v882
      %1250 = vmatpush.bf16.msra.mxu0 %v878
      %1251 = vmatpush.bf16.msra.mxu0 %v874
      %1252 = vmatpush.bf16.msra.mxu0 %v870
      %1253 = vmatpush.bf16.msra.mxu0 %v866
      %1254 = vmatpush.bf16.msra.mxu0 %v862
      %1255 = vmatpush.bf16.msra.mxu0 %v858
      %1256 = vmatmul.bf16.gmra.mxu0 %v308
      %v1257 = vpop.f32.mrf.mxu0
      %v1258 = vadd.f32 %v1245, %v1257
      %v1259 = vpop.f32.mrf.mxu0
      %1260 = vdwg.mxu0
      %1261 = vmatpush.bf16.msra.mxu0 %v918
      %1262 = vmatpush.bf16.msra.mxu0 %v914
      %1263 = vmatpush.bf16.msra.mxu0 %v910
      %1264 = vmatpush.bf16.msra.mxu0 %v906
      %1265 = vmatpush.bf16.msra.mxu0 %v902
      %1266 = vmatpush.bf16.msra.mxu0 %v898
      %1267 = vmatpush.bf16.msra.mxu0 %v894
      %1268 = vmatpush.bf16.msra.mxu0 %v890
      %1269 = vmatmul.bf16.gmra.mxu0 %v309
      %v1270 = vpop.f32.mrf.mxu0
      %v1271 = vadd.f32 %v1258, %v1270
      %v1272 = vpop.f32.mrf.mxu0
      %1273 = vdwg.mxu0
      %1274 = vmatpush.bf16.msra.mxu0 %v950
      %1275 = vmatpush.bf16.msra.mxu0 %v946
      %1276 = vmatpush.bf16.msra.mxu0 %v942
      %1277 = vmatpush.bf16.msra.mxu0 %v938
      %1278 = vmatpush.bf16.msra.mxu0 %v934
      %1279 = vmatpush.bf16.msra.mxu0 %v930
      %1280 = vmatpush.bf16.msra.mxu0 %v926
      %1281 = vmatpush.bf16.msra.mxu0 %v922
      %1282 = vmatmul.bf16.gmra.mxu0 %v310
      %v1283 = vpop.f32.mrf.mxu0
      %v1284 = vadd.f32 %v1271, %v1283
      %v1285 = vpop.f32.mrf.mxu0
      %1286 = vdwg.mxu0
      %v1287 = vadd.f32 %v299, %v1128
      %v1288 = vadd.f32 %v300, %v1180
      %v1289 = vadd.f32 %v301, %v1232
      %v1290 = vadd.f32 %v302, %v1284
      %1291 = vst [vmem:[#allocation2] sm:$0xff] %v1287
      %1292 = vst [vmem:[#allocation2 + $0x8] sm:$0xff] %v1288
      %1293 = vst [vmem:[#allocation2 + $0x10] sm:$0xff] %v1289
      %1294 = vst [vmem:[#allocation2 + $0x18] sm:$0xff] %v1290
      %p1295 = scmp.eq.s32.totalorder %s18, 1
      // Predicated region
      $region53: #{mlp_head.1} parent=47 // pred_check
        %p1296 = pneg %p1295
      $region54: #{mlp_head.1} parent=47 // pred_check_branch
        %1298 = sbr.rel (%p1296) target = $region56
      $region55: #{mlp_head.1} parent=47 // pred_region
        %v1299 = vld [vmem:[#allocation2] sm:$0xff]
        %v1300 = vld [vmem:[#allocation2 + $0x8] sm:$0xff]
        %v1301 = vld [vmem:[#allocation2 + $0x10] sm:$0xff]
        %v1302 = vld [vmem:[#allocation2 + $0x18] sm:$0xff]
        %v1303 = vld [vmem:[%s2] sm:$0xf]
        %v1305 = vperm.slane %v1303, 0
        %v1306 = vperm.slane %v1303, 1
        %v1307 = vperm.slane %v1303, 2
        %v1308 = vperm.slane %v1303, 3
        %v1313 = vadd.f32 %v1299, %v1305
        %v1314 = vadd.f32 %v1300, %v1306
        %v1315 = vadd.f32 %v1301, %v1307
        %v1316 = vadd.f32 %v1302, %v1308
        %v1317 = vmax.f32 %v1313, 0.0
        %v1318 = vmax.f32 %v1314, 0.0
        %v1319 = vmax.f32 %v1315, 0.0
        %v1320 = vmax.f32 %v1316, 0.0
        %v1321 = vpack.c.bf16 %v1317, %v1317
        %v1322 = vpack.c.bf16 %v1318, %v1318
        %v1323 = vpack.c.bf16 %v1319, %v1319
        %v1324 = vpack.c.bf16 %v1320, %v1320
        %v1325 = vld [vmem:[%s3] sm:$0xff]
        %v1326 = vld [vmem:[%s3 + $0x8] sm:$0xff]
        %v1327 = vld [vmem:[%s3 + $0x10] sm:$0xff]
        %v1328 = vld [vmem:[%s3 + $0x18] sm:$0xff]
        %v1329 = vld [vmem:[%s3 + $0x20] sm:$0xff]
        %v1330 = vld [vmem:[%s3 + $0x28] sm:$0xff]
        %v1331 = vld [vmem:[%s3 + $0x30] sm:$0xff]
        %v1332 = vld [vmem:[%s3 + $0x38] sm:$0xff]
        %v1333 = vld [vmem:[%s3 + $0x40] sm:$0xff]
        %v1334 = vld [vmem:[%s3 + $0x48] sm:$0xff]
        %v1335 = vld [vmem:[%s3 + $0x50] sm:$0xff]
        %v1336 = vld [vmem:[%s3 + $0x58] sm:$0xff]
        %v1337 = vld [vmem:[%s3 + $0x60] sm:$0xff]
        %v1338 = vld [vmem:[%s3 + $0x68] sm:$0xff]
        %v1339 = vld [vmem:[%s3 + $0x70] sm:$0xff]
        %v1340 = vld [vmem:[%s3 + $0x78] sm:$0xff]
        %v1341 = vld [vmem:[%s3 + $0x80] sm:$0xff]
        %v1342 = vld [vmem:[%s3 + $0x88] sm:$0xff]
        %v1343 = vld [vmem:[%s3 + $0x90] sm:$0xff]
        %v1344 = vld [vmem:[%s3 + $0x98] sm:$0xff]
        %v1345 = vld [vmem:[%s3 + $0xa0] sm:$0xff]
        %v1346 = vld [vmem:[%s3 + $0xa8] sm:$0xff]
        %v1347 = vld [vmem:[%s3 + $0xb0] sm:$0xff]
        %v1348 = vld [vmem:[%s3 + $0xb8] sm:$0xff]
        %v1349 = vld [vmem:[%s3 + $0xc0] sm:$0xff]
        %v1350 = vld [vmem:[%s3 + $0xc8] sm:$0xff]
        %v1351 = vld [vmem:[%s3 + $0xd0] sm:$0xff]
        %v1352 = vld [vmem:[%s3 + $0xd8] sm:$0xff]
        %v1353 = vld [vmem:[%s3 + $0xe0] sm:$0xff]
        %v1354 = vld [vmem:[%s3 + $0xe8] sm:$0xff]
        %v1355 = vld [vmem:[%s3 + $0xf0] sm:$0xff]
        %v1356 = vld [vmem:[%s3 + $0xf8] sm:$0xff]
        %v1357 = vld [vmem:[%s3 + $0x100] sm:$0xff]
        %v1358 = vld [vmem:[%s3 + $0x108] sm:$0xff]
        %v1359 = vld [vmem:[%s3 + $0x110] sm:$0xff]
        %v1360 = vld [vmem:[%s3 + $0x118] sm:$0xff]
        %v1361 = vld [vmem:[%s3 + $0x120] sm:$0xff]
        %v1362 = vld [vmem:[%s3 + $0x128] sm:$0xff]
        %v1363 = vld [vmem:[%s3 + $0x130] sm:$0xff]
        %v1364 = vld [vmem:[%s3 + $0x138] sm:$0xff]
        %v1365 = vld [vmem:[%s3 + $0x140] sm:$0xff]
        %v1366 = vld [vmem:[%s3 + $0x148] sm:$0xff]
        %v1367 = vld [vmem:[%s3 + $0x150] sm:$0xff]
        %v1368 = vld [vmem:[%s3 + $0x158] sm:$0xff]
        %v1369 = vld [vmem:[%s3 + $0x160] sm:$0xff]
        %v1370 = vld [vmem:[%s3 + $0x168] sm:$0xff]
        %v1371 = vld [vmem:[%s3 + $0x170] sm:$0xff]
        %v1372 = vld [vmem:[%s3 + $0x178] sm:$0xff]
        %v1373 = vld [vmem:[%s3 + $0x180] sm:$0xff]
        %v1374 = vld [vmem:[%s3 + $0x188] sm:$0xff]
        %v1375 = vld [vmem:[%s3 + $0x190] sm:$0xff]
        %v1376 = vld [vmem:[%s3 + $0x198] sm:$0xff]
        %v1377 = vld [vmem:[%s3 + $0x1a0] sm:$0xff]
        %v1378 = vld [vmem:[%s3 + $0x1a8] sm:$0xff]
        %v1379 = vld [vmem:[%s3 + $0x1b0] sm:$0xff]
        %v1380 = vld [vmem:[%s3 + $0x1b8] sm:$0xff]
        %v1381 = vld [vmem:[%s3 + $0x1c0] sm:$0xff]
        %v1382 = vld [vmem:[%s3 + $0x1c8] sm:$0xff]
        %v1383 = vld [vmem:[%s3 + $0x1d0] sm:$0xff]
        %v1384 = vld [vmem:[%s3 + $0x1d8] sm:$0xff]
        %v1385 = vld [vmem:[%s3 + $0x1e0] sm:$0xff]
        %v1386 = vld [vmem:[%s3 + $0x1e8] sm:$0xff]
        %v1387 = vld [vmem:[%s3 + $0x1f0] sm:$0xff]
        %v1388 = vld [vmem:[%s3 + $0x1f8] sm:$0xff]
        %v1389 = vld [vmem:[%s4] sm:$0x3]
        %v1391 = vperm.slane %v1389, 0
        %v1392 = vperm.slane %v1389, 1
        %v1459 = vunpack.c.l.b16 %v1325
        %v1460 = vunpack.c.h.b16 %v1325
        %v1461 = vunpack.c.l.b16 %v1326
        %v1462 = vunpack.c.h.b16 %v1326
        %v1463 = vunpack.c.l.b16 %v1327
        %v1464 = vunpack.c.h.b16 %v1327
        %v1465 = vunpack.c.l.b16 %v1328
        %v1466 = vunpack.c.h.b16 %v1328
        %v1467 = vunpack.c.l.b16 %v1329
        %v1468 = vunpack.c.h.b16 %v1329
        %v1469 = vunpack.c.l.b16 %v1330
        %v1470 = vunpack.c.h.b16 %v1330
        %v1471 = vunpack.c.l.b16 %v1331
        %v1472 = vunpack.c.h.b16 %v1331
        %v1473 = vunpack.c.l.b16 %v1332
        %v1474 = vunpack.c.h.b16 %v1332
        %v1475 = vunpack.c.l.b16 %v1333
        %v1476 = vunpack.c.h.b16 %v1333
        %v1477 = vunpack.c.l.b16 %v1334
        %v1478 = vunpack.c.h.b16 %v1334
        %v1479 = vunpack.c.l.b16 %v1335
        %v1480 = vunpack.c.h.b16 %v1335
        %v1481 = vunpack.c.l.b16 %v1336
        %v1482 = vunpack.c.h.b16 %v1336
        %v1483 = vunpack.c.l.b16 %v1337
        %v1484 = vunpack.c.h.b16 %v1337
        %v1485 = vunpack.c.l.b16 %v1338
        %v1486 = vunpack.c.h.b16 %v1338
        %v1487 = vunpack.c.l.b16 %v1339
        %v1488 = vunpack.c.h.b16 %v1339
        %v1489 = vunpack.c.l.b16 %v1340
        %v1490 = vunpack.c.h.b16 %v1340
        %v1491 = vunpack.c.l.b16 %v1341
        %v1492 = vunpack.c.h.b16 %v1341
        %v1493 = vunpack.c.l.b16 %v1342
        %v1494 = vunpack.c.h.b16 %v1342
        %v1495 = vunpack.c.l.b16 %v1343
        %v1496 = vunpack.c.h.b16 %v1343
        %v1497 = vunpack.c.l.b16 %v1344
        %v1498 = vunpack.c.h.b16 %v1344
        %v1499 = vunpack.c.l.b16 %v1345
        %v1500 = vunpack.c.h.b16 %v1345
        %v1501 = vunpack.c.l.b16 %v1346
        %v1502 = vunpack.c.h.b16 %v1346
        %v1503 = vunpack.c.l.b16 %v1347
        %v1504 = vunpack.c.h.b16 %v1347
        %v1505 = vunpack.c.l.b16 %v1348
        %v1506 = vunpack.c.h.b16 %v1348
        %v1507 = vunpack.c.l.b16 %v1349
        %v1508 = vunpack.c.h.b16 %v1349
        %v1509 = vunpack.c.l.b16 %v1350
        %v1510 = vunpack.c.h.b16 %v1350
        %v1511 = vunpack.c.l.b16 %v1351
        %v1512 = vunpack.c.h.b16 %v1351
        %v1513 = vunpack.c.l.b16 %v1352
        %v1514 = vunpack.c.h.b16 %v1352
        %v1515 = vunpack.c.l.b16 %v1353
        %v1516 = vunpack.c.h.b16 %v1353
        %v1517 = vunpack.c.l.b16 %v1354
        %v1518 = vunpack.c.h.b16 %v1354
        %v1519 = vunpack.c.l.b16 %v1355
        %v1520 = vunpack.c.h.b16 %v1355
        %v1521 = vunpack.c.l.b16 %v1356
        %v1522 = vunpack.c.h.b16 %v1356
        %v1523 = vunpack.c.l.b16 %v1357
        %v1524 = vunpack.c.h.b16 %v1357
        %v1525 = vunpack.c.l.b16 %v1358
        %v1526 = vunpack.c.h.b16 %v1358
        %v1527 = vunpack.c.l.b16 %v1359
        %v1528 = vunpack.c.h.b16 %v1359
        %v1529 = vunpack.c.l.b16 %v1360
        %v1530 = vunpack.c.h.b16 %v1360
        %v1531 = vunpack.c.l.b16 %v1361
        %v1532 = vunpack.c.h.b16 %v1361
        %v1533 = vunpack.c.l.b16 %v1362
        %v1534 = vunpack.c.h.b16 %v1362
        %v1535 = vunpack.c.l.b16 %v1363
        %v1536 = vunpack.c.h.b16 %v1363
        %v1537 = vunpack.c.l.b16 %v1364
        %v1538 = vunpack.c.h.b16 %v1364
        %v1539 = vunpack.c.l.b16 %v1365
        %v1540 = vunpack.c.h.b16 %v1365
        %v1541 = vunpack.c.l.b16 %v1366
        %v1542 = vunpack.c.h.b16 %v1366
        %v1543 = vunpack.c.l.b16 %v1367
        %v1544 = vunpack.c.h.b16 %v1367
        %v1545 = vunpack.c.l.b16 %v1368
        %v1546 = vunpack.c.h.b16 %v1368
        %v1547 = vunpack.c.l.b16 %v1369
        %v1548 = vunpack.c.h.b16 %v1369
        %v1549 = vunpack.c.l.b16 %v1370
        %v1550 = vunpack.c.h.b16 %v1370
        %v1551 = vunpack.c.l.b16 %v1371
        %v1552 = vunpack.c.h.b16 %v1371
        %v1553 = vunpack.c.l.b16 %v1372
        %v1554 = vunpack.c.h.b16 %v1372
        %v1555 = vunpack.c.l.b16 %v1373
        %v1556 = vunpack.c.h.b16 %v1373
        %v1557 = vunpack.c.l.b16 %v1374
        %v1558 = vunpack.c.h.b16 %v1374
        %v1559 = vunpack.c.l.b16 %v1375
        %v1560 = vunpack.c.h.b16 %v1375
        %v1561 = vunpack.c.l.b16 %v1376
        %v1562 = vunpack.c.h.b16 %v1376
        %v1563 = vunpack.c.l.b16 %v1377
        %v1564 = vunpack.c.h.b16 %v1377
        %v1565 = vunpack.c.l.b16 %v1378
        %v1566 = vunpack.c.h.b16 %v1378
        %v1567 = vunpack.c.l.b16 %v1379
        %v1568 = vunpack.c.h.b16 %v1379
        %v1569 = vunpack.c.l.b16 %v1380
        %v1570 = vunpack.c.h.b16 %v1380
        %v1571 = vunpack.c.l.b16 %v1381
        %v1572 = vunpack.c.h.b16 %v1381
        %v1573 = vunpack.c.l.b16 %v1382
        %v1574 = vunpack.c.h.b16 %v1382
        %v1575 = vunpack.c.l.b16 %v1383
        %v1576 = vunpack.c.h.b16 %v1383
        %v1577 = vunpack.c.l.b16 %v1384
        %v1578 = vunpack.c.h.b16 %v1384
        %v1579 = vunpack.c.l.b16 %v1385
        %v1580 = vunpack.c.h.b16 %v1385
        %v1581 = vunpack.c.l.b16 %v1386
        %v1582 = vunpack.c.h.b16 %v1386
        %v1583 = vunpack.c.l.b16 %v1387
        %v1584 = vunpack.c.h.b16 %v1387
        %v1585 = vunpack.c.l.b16 %v1388
        %v1586 = vunpack.c.h.b16 %v1388
        %v1587 = vpack.c.b16 %v1461, %v1459
        %v1588 = vpack.c.b16 %v1462, %v1460
        %v1589 = vpack.c.b16 %v1465, %v1463
        %v1590 = vpack.c.b16 %v1466, %v1464
        %v1591 = vpack.c.b16 %v1469, %v1467
        %v1592 = vpack.c.b16 %v1470, %v1468
        %v1593 = vpack.c.b16 %v1473, %v1471
        %v1594 = vpack.c.b16 %v1474, %v1472
        %v1595 = vpack.c.b16 %v1477, %v1475
        %v1596 = vpack.c.b16 %v1478, %v1476
        %v1597 = vpack.c.b16 %v1481, %v1479
        %v1598 = vpack.c.b16 %v1482, %v1480
        %v1599 = vpack.c.b16 %v1485, %v1483
        %v1600 = vpack.c.b16 %v1486, %v1484
        %v1601 = vpack.c.b16 %v1489, %v1487
        %v1602 = vpack.c.b16 %v1490, %v1488
        %v1603 = vpack.c.b16 %v1493, %v1491
        %v1604 = vpack.c.b16 %v1494, %v1492
        %v1605 = vpack.c.b16 %v1497, %v1495
        %v1606 = vpack.c.b16 %v1498, %v1496
        %v1607 = vpack.c.b16 %v1501, %v1499
        %v1608 = vpack.c.b16 %v1502, %v1500
        %v1609 = vpack.c.b16 %v1505, %v1503
        %v1610 = vpack.c.b16 %v1506, %v1504
        %v1611 = vpack.c.b16 %v1509, %v1507
        %v1612 = vpack.c.b16 %v1510, %v1508
        %v1613 = vpack.c.b16 %v1513, %v1511
        %v1614 = vpack.c.b16 %v1514, %v1512
        %v1615 = vpack.c.b16 %v1517, %v1515
        %v1616 = vpack.c.b16 %v1518, %v1516
        %v1617 = vpack.c.b16 %v1521, %v1519
        %v1618 = vpack.c.b16 %v1522, %v1520
        %v1619 = vpack.c.b16 %v1525, %v1523
        %v1620 = vpack.c.b16 %v1526, %v1524
        %v1621 = vpack.c.b16 %v1529, %v1527
        %v1622 = vpack.c.b16 %v1530, %v1528
        %v1623 = vpack.c.b16 %v1533, %v1531
        %v1624 = vpack.c.b16 %v1534, %v1532
        %v1625 = vpack.c.b16 %v1537, %v1535
        %v1626 = vpack.c.b16 %v1538, %v1536
        %v1627 = vpack.c.b16 %v1541, %v1539
        %v1628 = vpack.c.b16 %v1542, %v1540
        %v1629 = vpack.c.b16 %v1545, %v1543
        %v1630 = vpack.c.b16 %v1546, %v1544
        %v1631 = vpack.c.b16 %v1549, %v1547
        %v1632 = vpack.c.b16 %v1550, %v1548
        %v1633 = vpack.c.b16 %v1553, %v1551
        %v1634 = vpack.c.b16 %v1554, %v1552
        %v1635 = vpack.c.b16 %v1557, %v1555
        %v1636 = vpack.c.b16 %v1558, %v1556
        %v1637 = vpack.c.b16 %v1561, %v1559
        %v1638 = vpack.c.b16 %v1562, %v1560
        %v1639 = vpack.c.b16 %v1565, %v1563
        %v1640 = vpack.c.b16 %v1566, %v1564
        %v1641 = vpack.c.b16 %v1569, %v1567
        %v1642 = vpack.c.b16 %v1570, %v1568
        %v1643 = vpack.c.b16 %v1573, %v1571
        %v1644 = vpack.c.b16 %v1574, %v1572
        %v1645 = vpack.c.b16 %v1577, %v1575
        %v1646 = vpack.c.b16 %v1578, %v1576
        %v1647 = vpack.c.b16 %v1581, %v1579
        %v1648 = vpack.c.b16 %v1582, %v1580
        %v1649 = vpack.c.b16 %v1585, %v1583
        %v1650 = vpack.c.b16 %v1586, %v1584
        %1715 = vmatpush.bf16.msra.mxu0 %v1601
        %1716 = vmatpush.bf16.msra.mxu0 %v1599
        %1717 = vmatpush.bf16.msra.mxu0 %v1597
        %1718 = vmatpush.bf16.msra.mxu0 %v1595
        %1719 = vmatpush.bf16.msra.mxu0 %v1593
        %1720 = vmatpush.bf16.msra.mxu0 %v1591
        %1721 = vmatpush.bf16.msra.mxu0 %v1589
        %1722 = vmatpush.bf16.msra.mxu0 %v1587
        %1723 = vmatmul.bf16.gmra.mxu0 %v1321
        %v1724 = vpop.f32.mrf.mxu0
        %v1725 = vadd.f32 %v1391, %v1724
        %v1726 = vpop.f32.mrf.mxu0
        %1727 = vdwg.mxu0
        %1728 = vmatpush.bf16.msra.mxu0 %v1617
        %1729 = vmatpush.bf16.msra.mxu0 %v1615
        %1730 = vmatpush.bf16.msra.mxu0 %v1613
        %1731 = vmatpush.bf16.msra.mxu0 %v1611
        %1732 = vmatpush.bf16.msra.mxu0 %v1609
        %1733 = vmatpush.bf16.msra.mxu0 %v1607
        %1734 = vmatpush.bf16.msra.mxu0 %v1605
        %1735 = vmatpush.bf16.msra.mxu0 %v1603
        %1736 = vmatmul.bf16.gmra.mxu0 %v1322
        %v1737 = vpop.f32.mrf.mxu0
        %v1738 = vadd.f32 %v1725, %v1737
        %v1739 = vpop.f32.mrf.mxu0
        %1740 = vdwg.mxu0
        %1741 = vmatpush.bf16.msra.mxu0 %v1633
        %1742 = vmatpush.bf16.msra.mxu0 %v1631
        %1743 = vmatpush.bf16.msra.mxu0 %v1629
        %1744 = vmatpush.bf16.msra.mxu0 %v1627
        %1745 = vmatpush.bf16.msra.mxu0 %v1625
        %1746 = vmatpush.bf16.msra.mxu0 %v1623
        %1747 = vmatpush.bf16.msra.mxu0 %v1621
        %1748 = vmatpush.bf16.msra.mxu0 %v1619
        %1749 = vmatmul.bf16.gmra.mxu0 %v1323
        %v1750 = vpop.f32.mrf.mxu0
        %v1751 = vadd.f32 %v1738, %v1750
        %v1752 = vpop.f32.mrf.mxu0
        %1753 = vdwg.mxu0
        %1754 = vmatpush.bf16.msra.mxu0 %v1649
        %1755 = vmatpush.bf16.msra.mxu0 %v1647
        %1756 = vmatpush.bf16.msra.mxu0 %v1645
        %1757 = vmatpush.bf16.msra.mxu0 %v1643
        %1758 = vmatpush.bf16.msra.mxu0 %v1641
        %1759 = vmatpush.bf16.msra.mxu0 %v1639
        %1760 = vmatpush.bf16.msra.mxu0 %v1637
        %1761 = vmatpush.bf16.msra.mxu0 %v1635
        %1762 = vmatmul.bf16.gmra.mxu0 %v1324
        %v1763 = vpop.f32.mrf.mxu0
        %v1764 = vadd.f32 %v1751, %v1763
        %v1765 = vpop.f32.mrf.mxu0
        %1766 = vdwg.mxu0
        %1767 = vmatpush.bf16.msra.mxu0 %v1602
        %1768 = vmatpush.bf16.msra.mxu0 %v1600
        %1769 = vmatpush.bf16.msra.mxu0 %v1598
        %1770 = vmatpush.bf16.msra.mxu0 %v1596
        %1771 = vmatpush.bf16.msra.mxu0 %v1594
        %1772 = vmatpush.bf16.msra.mxu0 %v1592
        %1773 = vmatpush.bf16.msra.mxu0 %v1590
        %1774 = vmatpush.bf16.msra.mxu0 %v1588
        %1775 = vmatmul.bf16.gmra.mxu0 %v1321
        %v1776 = vpop.f32.mrf.mxu0
        %v1777 = vadd.f32 %v1392, %v1776
        %v1778 = vpop.f32.mrf.mxu0
        %1779 = vdwg.mxu0
        %1780 = vmatpush.bf16.msra.mxu0 %v1618
        %1781 = vmatpush.bf16.msra.mxu0 %v1616
        %1782 = vmatpush.bf16.msra.mxu0 %v1614
        %1783 = vmatpush.bf16.msra.mxu0 %v1612
        %1784 = vmatpush.bf16.msra.mxu0 %v1610
        %1785 = vmatpush.bf16.msra.mxu0 %v1608
        %1786 = vmatpush.bf16.msra.mxu0 %v1606
        %1787 = vmatpush.bf16.msra.mxu0 %v1604
        %1788 = vmatmul.bf16.gmra.mxu0 %v1322
        %v1789 = vpop.f32.mrf.mxu0
        %v1790 = vadd.f32 %v1777, %v1789
        %v1791 = vpop.f32.mrf.mxu0
        %1792 = vdwg.mxu0
        %1793 = vmatpush.bf16.msra.mxu0 %v1634
        %1794 = vmatpush.bf16.msra.mxu0 %v1632
        %1795 = vmatpush.bf16.msra.mxu0 %v1630
        %1796 = vmatpush.bf16.msra.mxu0 %v1628
        %1797 = vmatpush.bf16.msra.mxu0 %v1626
        %1798 = vmatpush.bf16.msra.mxu0 %v1624
        %1799 = vmatpush.bf16.msra.mxu0 %v1622
        %1800 = vmatpush.bf16.msra.mxu0 %v1620
        %1801 = vmatmul.bf16.gmra.mxu0 %v1323
        %v1802 = vpop.f32.mrf.mxu0
        %v1803 = vadd.f32 %v1790, %v1802
        %v1804 = vpop.f32.mrf.mxu0
        %1805 = vdwg.mxu0
        %1806 = vmatpush.bf16.msra.mxu0 %v1650
        %1807 = vmatpush.bf16.msra.mxu0 %v1648
        %1808 = vmatpush.bf16.msra.mxu0 %v1646
        %1809 = vmatpush.bf16.msra.mxu0 %v1644
        %1810 = vmatpush.bf16.msra.mxu0 %v1642
        %1811 = vmatpush.bf16.msra.mxu0 %v1640
        %1812 = vmatpush.bf16.msra.mxu0 %v1638
        %1813 = vmatpush.bf16.msra.mxu0 %v1636
        %1814 = vmatmul.bf16.gmra.mxu0 %v1324
        %v1815 = vpop.f32.mrf.mxu0
        %v1816 = vadd.f32 %v1803, %v1815
        %v1817 = vpop.f32.mrf.mxu0
        %1818 = vdwg.mxu0
        %v1819 = vmax.f32 %v1764, 0.0
        %v1820 = vmax.f32 %v1816, 0.0
        %v1821 = vpack.c.bf16 %v1819, %v1819
        %v1822 = vpack.c.bf16 %v1820, %v1820
        %v1823 = vld [vmem:[%s5] sm:$0xf]
        %v1824 = vld [vmem:[%s5 + $0x4] sm:$0xf]
        %v1825 = vld [vmem:[%s5 + $0x8] sm:$0xf]
        %v1826 = vld [vmem:[%s5 + $0xc] sm:$0xf]
        %v1827 = vld [vmem:[%s5 + $0x10] sm:$0xf]
        %v1828 = vld [vmem:[%s5 + $0x14] sm:$0xf]
        %v1829 = vld [vmem:[%s5 + $0x18] sm:$0xf]
        %v1830 = vld [vmem:[%s5 + $0x1c] sm:$0xf]
        %v1831 = vld [vmem:[%s5 + $0x20] sm:$0xf]
        %v1832 = vld [vmem:[%s5 + $0x24] sm:$0xf]
        %v1833 = vld [vmem:[%s5 + $0x28] sm:$0xf]
        %v1834 = vld [vmem:[%s5 + $0x2c] sm:$0xf]
        %v1835 = vld [vmem:[%s5 + $0x30] sm:$0xf]
        %v1836 = vld [vmem:[%s5 + $0x34] sm:$0xf]
        %v1837 = vld [vmem:[%s5 + $0x38] sm:$0xf]
        %v1838 = vld [vmem:[%s5 + $0x3c] sm:$0xf]
        %v1839 = vld [vmem:[%s5 + $0x40] sm:$0xf]
        %v1840 = vld [vmem:[%s5 + $0x44] sm:$0xf]
        %v1841 = vld [vmem:[%s5 + $0x48] sm:$0xf]
        %v1842 = vld [vmem:[%s5 + $0x4c] sm:$0xf]
        %v1843 = vld [vmem:[%s5 + $0x50] sm:$0xf]
        %v1844 = vld [vmem:[%s5 + $0x54] sm:$0xf]
        %v1845 = vld [vmem:[%s5 + $0x58] sm:$0xf]
        %v1846 = vld [vmem:[%s5 + $0x5c] sm:$0xf]
        %v1847 = vld [vmem:[%s5 + $0x60] sm:$0xf]
        %v1848 = vld [vmem:[%s5 + $0x64] sm:$0xf]
        %v1849 = vld [vmem:[%s5 + $0x68] sm:$0xf]
        %v1850 = vld [vmem:[%s5 + $0x6c] sm:$0xf]
        %v1851 = vld [vmem:[%s5 + $0x70] sm:$0xf]
        %v1852 = vld [vmem:[%s5 + $0x74] sm:$0xf]
        %v1853 = vld [vmem:[%s5 + $0x78] sm:$0xf]
        %v1854 = vld [vmem:[%s5 + $0x7c] sm:$0xf]
        %v1855 = vld [vmem:[%s6] sm:$0x1]
        %v1857 = vperm.slane %v1855, 0
        %v1891 = vunpack.c.l.b16 %v1823
        %v1892 = vunpack.c.l.b16 %v1824
        %v1893 = vunpack.c.l.b16 %v1825
        %v1894 = vunpack.c.l.b16 %v1826
        %v1895 = vunpack.c.l.b16 %v1827
        %v1896 = vunpack.c.l.b16 %v1828
        %v1897 = vunpack.c.l.b16 %v1829
        %v1898 = vunpack.c.l.b16 %v1830
        %v1899 = vunpack.c.l.b16 %v1831
        %v1900 = vunpack.c.l.b16 %v1832
        %v1901 = vunpack.c.l.b16 %v1833
        %v1902 = vunpack.c.l.b16 %v1834
        %v1903 = vunpack.c.l.b16 %v1835
        %v1904 = vunpack.c.l.b16 %v1836
        %v1905 = vunpack.c.l.b16 %v1837
        %v1906 = vunpack.c.l.b16 %v1838
        %v1907 = vunpack.c.l.b16 %v1839
        %v1908 = vunpack.c.l.b16 %v1840
        %v1909 = vunpack.c.l.b16 %v1841
        %v1910 = vunpack.c.l.b16 %v1842
        %v1911 = vunpack.c.l.b16 %v1843
        %v1912 = vunpack.c.l.b16 %v1844
        %v1913 = vunpack.c.l.b16 %v1845
        %v1914 = vunpack.c.l.b16 %v1846
        %v1915 = vunpack.c.l.b16 %v1847
        %v1916 = vunpack.c.l.b16 %v1848
        %v1917 = vunpack.c.l.b16 %v1849
        %v1918 = vunpack.c.l.b16 %v1850
        %v1919 = vunpack.c.l.b16 %v1851
        %v1920 = vunpack.c.l.b16 %v1852
        %v1921 = vunpack.c.l.b16 %v1853
        %v1922 = vunpack.c.l.b16 %v1854
        %v1923 = vpack.c.b16 %v1892, %v1891
        %v1924 = vpack.c.b16 %v1894, %v1893
        %v1925 = vpack.c.b16 %v1896, %v1895
        %v1926 = vpack.c.b16 %v1898, %v1897
        %v1927 = vpack.c.b16 %v1900, %v1899
        %v1928 = vpack.c.b16 %v1902, %v1901
        %v1929 = vpack.c.b16 %v1904, %v1903
        %v1930 = vpack.c.b16 %v1906, %v1905
        %v1931 = vpack.c.b16 %v1908, %v1907
        %v1932 = vpack.c.b16 %v1910, %v1909
        %v1933 = vpack.c.b16 %v1912, %v1911
        %v1934 = vpack.c.b16 %v1914, %v1913
        %v1935 = vpack.c.b16 %v1916, %v1915
        %v1936 = vpack.c.b16 %v1918, %v1917
        %v1937 = vpack.c.b16 %v1920, %v1919
        %v1938 = vpack.c.b16 %v1922, %v1921
        %1955 = vmatpush.bf16.msra.mxu0 %v1930
        %1956 = vmatpush.bf16.msra.mxu0 %v1929
        %1957 = vmatpush.bf16.msra.mxu0 %v1928
        %1958 = vmatpush.bf16.msra.mxu0 %v1927
        %1959 = vmatpush.bf16.msra.mxu0 %v1926
        %1960 = vmatpush.bf16.msra.mxu0 %v1925
        %1961 = vmatpush.bf16.msra.mxu0 %v1924
        %1962 = vmatpush.bf16.msra.mxu0 %v1923
        %1963 = vmatmul.bf16.gmra.mxu0 %v1821
        %v1964 = vpop.f32.mrf.mxu0
        %v1965 = vadd.f32 %v1857, %v1964
        %v1966 = vpop.f32.mrf.mxu0
        %1967 = vdwg.mxu0
        %1968 = vmatpush.bf16.msra.mxu0 %v1938
        %1969 = vmatpush.bf16.msra.mxu0 %v1937
        %1970 = vmatpush.bf16.msra.mxu0 %v1936
        %1971 = vmatpush.bf16.msra.mxu0 %v1935
        %1972 = vmatpush.bf16.msra.mxu0 %v1934
        %1973 = vmatpush.bf16.msra.mxu0 %v1933
        %1974 = vmatpush.bf16.msra.mxu0 %v1932
        %1975 = vmatpush.bf16.msra.mxu0 %v1931
        %1976 = vmatmul.bf16.gmra.mxu0 %v1822
        %v1977 = vpop.f32.mrf.mxu0
        %v1978 = vadd.f32 %v1965, %v1977
        %v1979 = vpop.f32.mrf.mxu0
        %1980 = vdwg.mxu0
        %1981 = vst [vmem:[%s7] sm:$0xff] %v1978
      $region56: #{mlp_head.1} parent=47 // pred_fallthru
        _
      // Predicated region
      $region57: #{mlp_head.1} parent=47 // pred_check
        %p1982 = pneg %p188
      $region58: #{mlp_head.1} parent=47 // pred_check_branch
        %1984 = sbr.rel (%p1982) target = $region60
      $region59: #{mlp_head.1} parent=47 // pred_region
        _
      $region60: #{mlp_head.1} parent=47 // pred_fallthru
        _
      // Predicated region
      $region61: #{mlp_head.1} parent=47 // pred_check
        %p1985 = pneg %p188
      $region62: #{mlp_head.1} parent=47 // pred_check_branch
        %1987 = sbr.rel (%p1985) target = $region64
      $region63: #{mlp_head.1} parent=47 // pred_region
        _
      $region64: #{mlp_head.1} parent=47 // pred_fallthru
        _
    $region48: #{mlp_head.1} parent=5 // pred_fallthru
      _
    %p1988 = scmp.le.s32.totalorder 2, %s13
    // Predicated region
    $region65: #{mlp_head.1} parent=5 // pred_check
      %p1989 = pneg %p1988
    $region66: #{mlp_head.1} parent=5 // pred_check_branch
      %1991 = sbr.rel (%p1989) target = $region68
    $region67: #{mlp_head.1} parent=5 // pred_region
      %s1992 = ssub.s32 %s13, 2
    $region68: #{mlp_head.1} parent=5 // pred_fallthru
      _
  $region6: #{mlp_head.1} parent=0 // loop_footer
    %s17 = sadd.s32 1, %s13
  $region7: #{mlp_head.1} parent=0 // loop_footer_branch
    %12 = sbr.rel target = $region3
  $region8: #{mlp_head.1} parent=0 // loop_exit
    _

</llo_original>
